<compile_context>
chip_gen: v7x
topology: tpu7x:2x2x1
jax: 0.10.0
libtpu: 0.0.40
codegen_flags: <defaults>
</compile_context>

<pallas_src>
import functools

import jax
import jax.numpy as jnp
from jax.experimental import pallas as pl
from jax.experimental.pallas import tpu as pltpu


def _round_up(n: int, m: int) -> int:
    return ((n + m - 1) // m) * m


def _mlp_layer_grid_kernel(x_ref, w_in_ref, b_in_ref, w_h_ref, b_h_ref,
                           w_out_ref, b_out_ref, o_ref, h_ref, *, precision):
    """One grid step == one hidden layer (grid=(num_hidden,), "arbitrary").

    The running activation is carried across grid steps in an f32 VMEM scratch;
    the next layer's (1, H, H) weight block is prefetched by the BlockSpec
    pipeline while the current layer's matmul runs on the MXU.
    """
    l = pl.program_id(0)
    cdtype = w_h_ref.dtype  # MXU operand dtype (weights pre-cast in wrapper)

    @pl.when(l == 0)
    def _():
        # Input layer: Linear, no activation.  f32 accumulator in scratch.
        h_ref[...] = jnp.dot(
            x_ref[...], w_in_ref[...],
            preferred_element_type=jnp.float32,
            precision=precision) + b_in_ref[...]

    # Hidden layer l: Linear + ReLU.  Only the small (B, H) activation is cast
    # in-kernel; weights arrive already in the compute dtype (no VPU casts of
    # H*H tiles).  Bias add and ReLU stay on the f32 accumulator.
    h = jnp.dot(h_ref[...].astype(cdtype), w_h_ref[0],
                preferred_element_type=jnp.float32,
                precision=precision) + b_h_ref[0]
    h_ref[...] = jnp.maximum(h, 0.0)

    @pl.when(l == pl.num_programs(0) - 1)
    def _():
        # Output layer: Linear, no activation.
        y = jnp.dot(h_ref[...].astype(cdtype), w_out_ref[...],
                    preferred_element_type=jnp.float32,
                    precision=precision) + b_out_ref[...]
        o_ref[...] = y.astype(o_ref.dtype)


def _mlp_no_hidden_kernel(x_ref, w_in_ref, b_in_ref, w_out_ref, b_out_ref,
                          o_ref, *, precision):
    """num_hidden_layers == 0: input Linear then output Linear, one block."""
    cdtype = w_in_ref.dtype
    h = jnp.dot(x_ref[...], w_in_ref[...],
                preferred_element_type=jnp.float32,
                precision=precision) + b_in_ref[...]
    y = jnp.dot(h.astype(cdtype), w_out_ref[...],
                preferred_element_type=jnp.float32,
                precision=precision) + b_out_ref[...]
    o_ref[...] = y.astype(o_ref.dtype)


def mlp_forward(params, x, *, compute_dtype=jnp.bfloat16):
    """Matches MLP.forward: input Linear, then N x (Linear + ReLU), then
    output Linear, as a single fused Pallas TPU kernel.

    `compute_dtype` is the MXU operand dtype (bf16 default: native MXU path on
    v5e/v6e/v7x; pass jnp.float32 for full-precision operands).  Accumulation,
    bias add and ReLU are always f32.
    """
    batch, in_f = x.shape
    w_in, b_in = params["input_layer"]
    hidden_layers = params["hidden_layers"]
    w_out, b_out = params["output_layer"]
    hid = w_in.shape[1]
    out_f = w_out.shape[1]
    num_hidden = len(hidden_layers)
    out_dtype = x.dtype

    # f32 operands: force the exact-f32 MXU path; bf16: default precision.
    precision = (jax.lax.Precision.HIGHEST
                 if jnp.dtype(compute_dtype) == jnp.float32
                 else jax.lax.Precision.DEFAULT)

    # Lane-dense padding: feature dims to 128 (lane axis), batch to 8
    # (sublane).  Zero padding is inert (zero rows/cols, zero bias pads,
    # ReLU(0)=0); the real result is sliced out at the end.
    # TODO(synk): for realistic batches, pad/tile M to 128 (v5e) / 256
    # (v6e, v7x), add a leading "parallel" batch grid axis (2 TCs on v7x), and
    # for very large H on v7x add a 512-1024-col N-tile on the hidden dim.
    bp = _round_up(max(batch, 1), 8)
    ip = _round_up(in_f, 128)
    hp = _round_up(hid, 128)
    op = _round_up(out_f, 128)

    def pad2(a, rows, cols, dtype):
        a = a.astype(dtype)
        return jnp.pad(a, ((0, rows - a.shape[0]), (0, cols - a.shape[1])))

    # Weights (and x) are cast to the compute dtype HERE, not in the kernel.
    # Biases stay f32 (added onto the f32 accumulator).
    x_p = pad2(x, bp, ip, compute_dtype)
    w_in_p = pad2(w_in, ip, hp, compute_dtype)
    b_in_p = pad2(b_in.reshape(1, -1), 1, hp, jnp.float32)
    w_out_p = pad2(w_out, hp, op, compute_dtype)
    b_out_p = pad2(b_out.reshape(1, -1), 1, op, jnp.float32)

    flops = 2 * bp * (ip * hp + num_hidden * hp * hp + hp * op)
    csz = jnp.dtype(compute_dtype).itemsize

    if num_hidden == 0:
        # Dedicated kernel: no dummy hidden-weight arrays are DMA'd.
        operands = (x_p, w_in_p, b_in_p, w_out_p, b_out_p)
        bytes_accessed = int(sum(int(a.size) * a.dtype.itemsize
                                 for a in operands) + bp * op * 4)
        vmem_need = bytes_accessed + bp * hp * 4 + bp * op * 4
        out_p = pl.pallas_call(
            functools.partial(_mlp_no_hidden_kernel, precision=precision),
            out_shape=jax.ShapeDtypeStruct((bp, op), jnp.float32),
            compiler_params=pltpu.CompilerParams(
                vmem_limit_bytes=int(min(96 << 20,
                                         max(2 * vmem_need, 8 << 20)))),
            cost_estimate=pl.CostEstimate(
                flops=flops, transcendentals=0,
                bytes_accessed=bytes_accessed),
        )(*operands)
        return out_p[:batch, :out_f].astype(out_dtype)

    # Stacked (L, H, H) / (L, 1, H) hidden-layer params; only one (1, H, H)
    # block per grid step is brought into VMEM (double-buffered by Pallas).
    w_h_p = jnp.stack([pad2(w, hp, hp, compute_dtype)
                       for (w, _) in hidden_layers])
    b_h_p = jnp.stack([pad2(b.reshape(1, -1), 1, hp, jnp.float32)
                       for (_, b) in hidden_layers])

    operands = (x_p, w_in_p, b_in_p, w_h_p, b_h_p, w_out_p, b_out_p)
    # Every operand is streamed HBM->VMEM exactly once; output written once.
    bytes_accessed = int(sum(int(a.size) * a.dtype.itemsize
                             for a in operands) + bp * op * 4)

    # VMEM budget: 2 double-buffered hidden weight blocks + resident small
    # operands + activation scratch + output.  (v7x: 64 MiB physical,
    # 32 MiB default scoped limit -> set the limit explicitly.)
    vmem_need = (2 * (hp * hp * csz + hp * 4)               # w_h / b_h buffers
                 + bp * ip * csz + ip * hp * csz + hp * 4   # x, w_in, b_in
                 + hp * op * csz + op * 4                   # w_out, b_out
                 + bp * hp * 4 + bp * op * 4)               # scratch, out
    vmem_limit = int(min(96 << 20, max(2 * vmem_need, 8 << 20)))

    grid_spec = pltpu.PrefetchScalarGridSpec(
        num_scalar_prefetch=0,
        grid=(num_hidden,),
        in_specs=[
            pl.BlockSpec((bp, ip), lambda l: (0, 0)),        # x (resident)
            pl.BlockSpec((ip, hp), lambda l: (0, 0)),        # w_in (resident)
            pl.BlockSpec((1, hp), lambda l: (0, 0)),         # b_in
            pl.BlockSpec((1, hp, hp), lambda l: (l, 0, 0)),  # w_h[l] (streamed)
            pl.BlockSpec((1, 1, hp), lambda l: (l, 0, 0)),   # b_h[l]
            pl.BlockSpec((hp, op), lambda l: (0, 0)),        # w_out (resident)
            pl.BlockSpec((1, op), lambda l: (0, 0)),         # b_out
        ],
        out_specs=pl.BlockSpec((bp, op), lambda l: (0, 0)),
        scratch_shapes=[pltpu.VMEM((bp, hp), jnp.float32)],  # carried activation
    )

    out_p = pl.pallas_call(
        functools.partial(_mlp_layer_grid_kernel, precision=precision),
        out_shape=jax.ShapeDtypeStruct((bp, op), jnp.float32),
        grid_spec=grid_spec,
        compiler_params=pltpu.CompilerParams(
            # Layer axis carries the activation through scratch -> "arbitrary".
            dimension_semantics=("arbitrary",),
            vmem_limit_bytes=vmem_limit),
        cost_estimate=pl.CostEstimate(
            flops=flops, transcendentals=0, bytes_accessed=bytes_accessed),
    )(*operands)

    return out_p[:batch, :out_f].astype(out_dtype)


def init_mlp_params(key, input_size, hidden_size, num_hidden_layers,
                    output_size, dtype=jnp.float32):
    """Deterministic synthetic parameters with the same shapes as the PyTorch
    module.  Weights are stored transposed: (in_features, out_features)."""
    params = {}
    k = key

    def _init(k, in_f, out_f):
        kw, kb, knext = jax.random.split(k, 3)
        # Mimic PyTorch Linear default init: U(-1/sqrt(in), 1/sqrt(in))
        bound = 1.0 / jnp.sqrt(jnp.asarray(in_f, dtype))
        w = jax.random.uniform(kw, (in_f, out_f), dtype, -bound, bound)
        b = jax.random.uniform(kb, (out_f,), dtype, -bound, bound)
        return (w, b), knext

    params["input_layer"], k = _init(k, input_size, hidden_size)
    params["hidden_layers"] = []
    for _ in range(num_hidden_layers):
        layer, k = _init(k, hidden_size, hidden_size)
        params["hidden_layers"].append(layer)
    params["output_layer"], k = _init(k, hidden_size, output_size)
    return params


if __name__ == "__main__":
    # Small shapes consistent with the module's (batch_size, input_size) input.
    batch_size = 2
    input_size = 16
    hidden_size = 32
    num_hidden_layers = 2
    output_size = 8

    key = jax.random.PRNGKey(0)
    kx, kp = jax.random.split(key)
    x = jax.random.normal(kx, (batch_size, input_size), jnp.float32)
    params = init_mlp_params(kp, input_size, hidden_size,
                             num_hidden_layers, output_size)

    # Pure-JAX reference of the same forward semantics (f32 throughout).
    def ref_forward(p, xx):
        h = xx @ p["input_layer"][0] + p["input_layer"][1]
        for (w, b) in p["hidden_layers"]:
            h = jnp.maximum(h @ w + b, 0.0)
        return h @ p["output_layer"][0] + p["output_layer"][1]

    ref = ref_forward(params, x)

    # f32 operand path (precision=HIGHEST): tight tolerance vs the reference.
    out_f32 = jax.block_until_ready(
        mlp_forward(params, x, compute_dtype=jnp.float32))
    assert out_f32.shape == (batch_size, output_size)
    assert jnp.allclose(out_f32, ref, atol=1e-5, rtol=1e-5)

    # bf16 MXU-operand path (default; f32 accumulation): bf16 mantissa gives
    # ~0.4% per-op relative error, so the tolerance is loosened accordingly.
    out_bf16 = jax.block_until_ready(mlp_forward(params, x))
    assert out_bf16.shape == (batch_size, output_size)
    assert jnp.allclose(out_bf16, ref, atol=5e-2, rtol=5e-2)

    # Degenerate case: no hidden layers (dedicated kernel, no dummy arrays).
    params0 = init_mlp_params(kp, input_size, hidden_size, 0, output_size)
    ref0 = ref_forward(params0, x)
    out0 = jax.block_until_ready(
        mlp_forward(params0, x, compute_dtype=jnp.float32))
    assert out0.shape == (batch_size, output_size)
    assert jnp.allclose(out0, ref0, atol=1e-5, rtol=1e-5)

    print("KERNEL_OK")
</pallas_src>

<mosaic_0001>
module attributes {stable_mosaic.version = 11 : i64} {
  func.func @_mlp_layer_grid_kernel(%arg0: i32, %arg1: memref<8x128xf32, #tpu.memory_space<vmem>>, %arg2: memref<128x128xf32, #tpu.memory_space<vmem>>, %arg3: memref<1x128xf32, #tpu.memory_space<vmem>>, %arg4: memref<1x128x128xf32, #tpu.memory_space<vmem>>, %arg5: memref<1x1x128xf32, #tpu.memory_space<vmem>>, %arg6: memref<128x128xf32, #tpu.memory_space<vmem>>, %arg7: memref<1x128xf32, #tpu.memory_space<vmem>>, %arg8: memref<8x128xf32, #tpu.memory_space<vmem>>, %arg9: memref<8x128xf32, #tpu.memory_space<vmem>>) attributes {dimension_semantics = [#tpu.dimension_semantics<arbitrary>], iteration_bounds = array<i64: 2>, scalar_prefetch = 0 : i64, scratch_operands = 1 : i64, tpu.core_type = #tpu.core_type<tc>, window_params = [{pipeline_mode = #tpu.pipeline_mode<synchronous>, transform_indices = @transform_0, window_bounds = array<i64: 8, 128>}, {pipeline_mode = #tpu.pipeline_mode<synchronous>, transform_indices = @transform_1, window_bounds = array<i64: 128, 128>}, {pipeline_mode = #tpu.pipeline_mode<synchronous>, transform_indices = @transform_2, window_bounds = array<i64: 1, 128>}, {transform_indices = @transform_3, window_bounds = array<i64: 1, 128, 128>}, {transform_indices = @transform_4, window_bounds = array<i64: 1, 1, 128>}, {pipeline_mode = #tpu.pipeline_mode<synchronous>, transform_indices = @transform_5, window_bounds = array<i64: 128, 128>}, {pipeline_mode = #tpu.pipeline_mode<synchronous>, transform_indices = @transform_6, window_bounds = array<i64: 1, 128>}, {pipeline_mode = #tpu.pipeline_mode<synchronous>, transform_indices = @transform_7, window_bounds = array<i64: 8, 128>}]} {
    %c0_i32 = arith.constant 0 : i32
    %0 = arith.cmpi eq, %arg0, %c0_i32 : i32
    %1 = arith.extui %0 : i1 to i32
    %c0_i32_0 = arith.constant 0 : i32
    %2 = arith.cmpi ne, %1, %c0_i32_0 : i32
    scf.if %2 {
      %c0_12 = arith.constant 0 : index
      %c0_13 = arith.constant 0 : index
      %17 = vector.load %arg1[%c0_12, %c0_13] : memref<8x128xf32, #tpu.memory_space<vmem>>, vector<8x128xf32>
      %c0_14 = arith.constant 0 : index
      %c0_15 = arith.constant 0 : index
      %18 = vector.load %arg2[%c0_14, %c0_15] : memref<128x128xf32, #tpu.memory_space<vmem>>, vector<128x128xf32>
      %cst_16 = arith.constant dense<0.000000e+00> : vector<8x128xf32>
      %19 = tpu.matmul %17, %18, %cst_16 {dimension_numbers = #tpu.dot_dimension_numbers<[1], [0], [0], [1], [0, 0, 1, 1], [], []>, precision = #tpu.contract_precision<fp32>} : vector<8x128xf32>, vector<128x128xf32>, vector<8x128xf32> -> vector<8x128xf32>
      %c0_17 = arith.constant 0 : index
      %c0_18 = arith.constant 0 : index
      %20 = vector.load %arg3[%c0_17, %c0_18] : memref<1x128xf32, #tpu.memory_space<vmem>>, vector<1x128xf32>
      %21 = vector.broadcast %20 : vector<1x128xf32> to vector<8x128xf32>
      %22 = arith.addf %19, %21 : vector<8x128xf32>
      %c0_19 = arith.constant 0 : index
      %c0_20 = arith.constant 0 : index
      %23 = vector.load %arg9[%c0_19, %c0_20] : memref<8x128xf32, #tpu.memory_space<vmem>>, vector<8x128xf32>
      tpu.vector_store %arg9[%c0_19, %c0_20], %22 {strides = array<i32>} : memref<8x128xf32, #tpu.memory_space<vmem>>, vector<8x128xf32>,
    } else {
    }
    %c0 = arith.constant 0 : index
    %c0_1 = arith.constant 0 : index
    %3 = vector.load %arg9[%c0, %c0_1] : memref<8x128xf32, #tpu.memory_space<vmem>>, vector<8x128xf32>
    %c0_2 = arith.constant 0 : index
    %c0_3 = arith.constant 0 : index
    %c0_4 = arith.constant 0 : index
    %4 = vector.load %arg4[%c0_2, %c0_3, %c0_4] : memref<1x128x128xf32, #tpu.memory_space<vmem>>, vector<1x128x128xf32>
    %5 = vector.shape_cast %4 : vector<1x128x128xf32> to vector<128x128xf32>
    %cst = arith.constant dense<0.000000e+00> : vector<8x128xf32>
    %6 = tpu.matmul %3, %5, %cst {dimension_numbers = #tpu.dot_dimension_numbers<[1], [0], [0], [1], [0, 0, 1, 1], [], []>, precision = #tpu.contract_precision<fp32>} : vector<8x128xf32>, vector<128x128xf32>, vector<8x128xf32> -> vector<8x128xf32>
    %c0_5 = arith.constant 0 : index
    %c0_6 = arith.constant 0 : index
    %c0_7 = arith.constant 0 : index
    %7 = vector.load %arg5[%c0_5, %c0_6, %c0_7] : memref<1x1x128xf32, #tpu.memory_space<vmem>>, vector<1x1x128xf32>
    %8 = vector.shape_cast %7 : vector<1x1x128xf32> to vector<1x128xf32>
    %9 = vector.broadcast %8 : vector<1x128xf32> to vector<8x128xf32>
    %10 = arith.addf %6, %9 : vector<8x128xf32>
    %cst_8 = arith.constant 0.000000e+00 : f32
    %11 = vector.broadcast %cst_8 : f32 to vector<8x128xf32>
    %12 = arith.maximumf %10, %11 : vector<8x128xf32>
    %c0_9 = arith.constant 0 : index
    %c0_10 = arith.constant 0 : index
    %13 = vector.load %arg9[%c0_9, %c0_10] : memref<8x128xf32, #tpu.memory_space<vmem>>, vector<8x128xf32>
    tpu.vector_store %arg9[%c0_9, %c0_10], %12 {strides = array<i32>} : memref<8x128xf32, #tpu.memory_space<vmem>>, vector<8x128xf32>,
    %c1_i32 = arith.constant 1 : i32
    %14 = arith.cmpi eq, %arg0, %c1_i32 : i32
    %15 = arith.extui %14 : i1 to i32
    %c0_i32_11 = arith.constant 0 : i32
    %16 = arith.cmpi ne, %15, %c0_i32_11 : i32
    scf.if %16 {
      %c0_12 = arith.constant 0 : index
      %c0_13 = arith.constant 0 : index
      %17 = vector.load %arg9[%c0_12, %c0_13] : memref<8x128xf32, #tpu.memory_space<vmem>>, vector<8x128xf32>
      %c0_14 = arith.constant 0 : index
      %c0_15 = arith.constant 0 : index
      %18 = vector.load %arg6[%c0_14, %c0_15] : memref<128x128xf32, #tpu.memory_space<vmem>>, vector<128x128xf32>
      %cst_16 = arith.constant dense<0.000000e+00> : vector<8x128xf32>
      %19 = tpu.matmul %17, %18, %cst_16 {dimension_numbers = #tpu.dot_dimension_numbers<[1], [0], [0], [1], [0, 0, 1, 1], [], []>, precision = #tpu.contract_precision<fp32>} : vector<8x128xf32>, vector<128x128xf32>, vector<8x128xf32> -> vector<8x128xf32>
      %c0_17 = arith.constant 0 : index
      %c0_18 = arith.constant 0 : index
      %20 = vector.load %arg7[%c0_17, %c0_18] : memref<1x128xf32, #tpu.memory_space<vmem>>, vector<1x128xf32>
      %21 = vector.broadcast %20 : vector<1x128xf32> to vector<8x128xf32>
      %22 = arith.addf %19, %21 : vector<8x128xf32>
      %c0_19 = arith.constant 0 : index
      %c0_20 = arith.constant 0 : index
      %23 = vector.load %arg8[%c0_19, %c0_20] : memref<8x128xf32, #tpu.memory_space<vmem>>, vector<8x128xf32>
      tpu.vector_store %arg8[%c0_19, %c0_20], %22 {strides = array<i32>} : memref<8x128xf32, #tpu.memory_space<vmem>>, vector<8x128xf32>,
    } else {
    }
    return
  }
  func.func @transform_0(%arg0: i32) -> (i32, i32) {
    %c0_i32 = arith.constant 0 : i32
    %c0_i32_0 = arith.constant 0 : i32
    %c0_i32_1 = arith.constant 0 : i32
    return %c0_i32, %c0_i32_0 : i32, i32
  }
  func.func @transform_1(%arg0: i32) -> (i32, i32) {
    %c0_i32 = arith.constant 0 : i32
    %c0_i32_0 = arith.constant 0 : i32
    %c0_i32_1 = arith.constant 0 : i32
    return %c0_i32, %c0_i32_0 : i32, i32
  }
  func.func @transform_2(%arg0: i32) -> (i32, i32) {
    %c0_i32 = arith.constant 0 : i32
    %c0_i32_0 = arith.constant 0 : i32
    %c0_i32_1 = arith.constant 0 : i32
    return %c0_i32, %c0_i32_0 : i32, i32
  }
  func.func @transform_3(%arg0: i32) -> (i32, i32, i32) {
    %c0_i32 = arith.constant 0 : i32
    %c0_i32_0 = arith.constant 0 : i32
    %c0_i32_1 = arith.constant 0 : i32
    return %arg0, %c0_i32, %c0_i32_0 : i32, i32, i32
  }
  func.func @transform_4(%arg0: i32) -> (i32, i32, i32) {
    %c0_i32 = arith.constant 0 : i32
    %c0_i32_0 = arith.constant 0 : i32
    %c0_i32_1 = arith.constant 0 : i32
    return %arg0, %c0_i32, %c0_i32_0 : i32, i32, i32
  }
  func.func @transform_5(%arg0: i32) -> (i32, i32) {
    %c0_i32 = arith.constant 0 : i32
    %c0_i32_0 = arith.constant 0 : i32
    %c0_i32_1 = arith.constant 0 : i32
    return %c0_i32, %c0_i32_0 : i32, i32
  }
  func.func @transform_6(%arg0: i32) -> (i32, i32) {
    %c0_i32 = arith.constant 0 : i32
    %c0_i32_0 = arith.constant 0 : i32
    %c0_i32_1 = arith.constant 0 : i32
    return %c0_i32, %c0_i32_0 : i32, i32
  }
  func.func @transform_7(%arg0: i32) -> (i32, i32) {
    %c0_i32 = arith.constant 0 : i32
    %c0_i32_0 = arith.constant 0 : i32
    %c0_i32_1 = arith.constant 0 : i32
    return %c0_i32, %c0_i32_0 : i32, i32
  }
}

</mosaic_0001>

<llo_original>
// kernel: tpu_custom_call.1
$region0: #{tpu_custom_call.1}
  #allocation0 [shape = 'u32[]', space=smem, size = 0x4, offset = 0x4, fixed_abs, tag = 'smem constant byte address 0x4 - core index']
  #allocation1 [shape = 'u32[144,128]{1,0:T(1,128)}', space=vmem, size = 0x12000, scoped, tag = 'internal scratch']
  #allocation2 [shape = 'f32[8,128]{1,0:T(8,128)}', space=vmem, size = 0x1000, scoped, tag = 'scratch operand']
  %s0 = inlined_call_operand.hbm [shape: f32[8,128], index: 0, kind: input, shape index: {}]
  %s1 = inlined_call_operand.hbm [shape: f32[128,128], index: 1, kind: input, shape index: {}]
  %s2 = inlined_call_operand.vmem [shape: f32[1,128], index: 2, kind: input, shape index: {}]
  %s3 = inlined_call_operand.hbm [shape: f32[2,128,128], index: 3, kind: input, shape index: {}]
  %s4 = inlined_call_operand.vmem [shape: f32[2,1,128], index: 4, kind: input, shape index: {}]
  %s5 = inlined_call_operand.hbm [shape: f32[128,128], index: 5, kind: input, shape index: {}]
  %s6 = inlined_call_operand.vmem [shape: f32[1,128], index: 6, kind: input, shape index: {}]
  %s7 = inlined_call_operand.hbm [shape: f32[8,128], index: 7, kind: output, shape index: {}]
  %s8 = sld [smem:[#allocation0]]
  $region85: #{tpu_custom_call.1} parent=0
    _
  %s10 = ssub.s32 1, %s8
  %s11 = scalar_select 0, %s10, %s8
  $region1: #{tpu_custom_call.1} parent=0
    #allocation3 [shape = 'u8[4096]{0}', space=vmem, size = 0x1000, scoped, tag = 'input window, operand 0, single buffered']
    #allocation4 [shape = 's32[2]{0}', space=sflag, size = 0x8, scoped, tag = 'scoped memory for tpu_custom_call.1']
    #allocation5 [shape = 's32[2]{0}', space=sflag, size = 0x8, scoped, tag = 'scoped memory for tpu_custom_call.1']
    #allocation6 [shape = 'u8[65536]{0}', space=vmem, size = 0x10000, scoped, tag = 'input window, operand 1, single buffered']
    #allocation7 [shape = 's32[1]{0}', space=sflag, size = 0x4, scoped, tag = 'scoped memory for tpu_custom_call.1']
    #allocation8 [shape = 'u8[131072]{0}', space=vmem, size = 0x20000, scoped, tag = 'input window, operand 3']
    #allocation9 [shape = 'u8[65536]{0}', space=vmem, size = 0x10000, scoped, tag = 'input window, operand 5, single buffered']
    #allocation10 [shape = 'u8[4096]{0}', space=vmem, size = 0x1000, scoped, tag = 'output window, operand 0, single buffered']
    %12 = vsyncpa [#allocation4], 0
    %13 = vsyncpa [#allocation7], 0
    %14 = vsyncpa [#allocation5], 0
    loop: start=0, step=1, limit=4
    $region2: #{tpu_custom_call.1} parent=1 // loop_pre_header
      _
    $region3: #{tpu_custom_call.1} parent=1 // loop_header
      %s16 = sphi 0, %s20
      %p17 = scmp.ge.s32.totalorder %s16, 4
      %s24 = sphi 0, %s24
      %s26 = sphi 0, %s24
      %s27 = sphi 0, %s26
      %s41 = sphi 0, %s27
      %s45 = sphi 0, %s45
      %s47 = sphi 0, %s45
      %s48 = sphi 0, %s47
      %s62 = sphi 0, %s48
      %s66 = sphi 0, %s66
      %s68 = sphi 0, %s66
      %s69 = sphi 0, %s68
      %s83 = sphi 0, %s69
      %s89 = sphi 0, %s91
      %s92 = sphi 0, %s89
      %s93 = sphi 0, %s92
      %s109 = sphi 0, %s93
      %s115 = sphi 0, %s117
      %s118 = sphi 0, %s115
      %s119 = sphi 0, %s118
      %s135 = sphi 0, %s119
      %s139 = sphi 0, %s139
      %s141 = sphi 0, %s139
      %s142 = sphi 0, %s141
      %s156 = sphi 0, %s142
      %s160 = sphi 0, %s160
      %s162 = sphi 0, %s160
      %s163 = sphi 0, %s162
      %s177 = sphi 0, %s163
      %s181 = sphi 0, %s181
      %s183 = sphi 0, %s181
      %s184 = sphi 0, %s183
      %s198 = sphi 0, %s184
    $region4: #{tpu_custom_call.1} parent=1 // loop_header_branch
      %19 = sbr.rel (%p17) target = $region8
    $region5: #{tpu_custom_call.1} parent=1 // loop_body
      %s21 = ssub.s32 %s16, 1
      %s22 = ssub.s32 %s16, 2
      %s23 = sadd.s32 %s16, 1
      %s25 = sadd.s32 %s24, 1
      %p28 = scmp.eq.s32.totalorder %s16, 1
      %p29 = scmp.ne.s32.totalorder %s24, %s26
      %p30 = scmp.eq.s32.totalorder %s16, 0
      %p31 = por %p29, %p30
      %p32 = scmp.ne.s32.totalorder %s24, %s26
      %p33 = scmp.eq.s32.totalorder %s21, 1
      %p34 = por %p32, %p33
      %p35 = scmp.ne.s32.totalorder %s26, %s27
      %p36 = scmp.eq.s32.totalorder %s21, 0
      %p37 = por %p35, %p36
      %p38 = scmp.ne.s32.totalorder %s26, %s27
      %p39 = scmp.eq.s32.totalorder %s22, 1
      %p40 = por %p38, %p39
      %p42 = scmp.ne.s32.totalorder %s27, %s41
      %p43 = scmp.eq.s32.totalorder %s22, 0
      %p44 = por %p42, %p43
      %s46 = sadd.s32 %s45, 1
      %p49 = scmp.eq.s32.totalorder %s16, 1
      %p50 = scmp.ne.s32.totalorder %s45, %s47
      %p51 = scmp.eq.s32.totalorder %s16, 0
      %p52 = por %p50, %p51
      %p53 = scmp.ne.s32.totalorder %s45, %s47
      %p54 = scmp.eq.s32.totalorder %s21, 1
      %p55 = por %p53, %p54
      %p56 = scmp.ne.s32.totalorder %s47, %s48
      %p57 = scmp.eq.s32.totalorder %s21, 0
      %p58 = por %p56, %p57
      %p59 = scmp.ne.s32.totalorder %s47, %s48
      %p60 = scmp.eq.s32.totalorder %s22, 1
      %p61 = por %p59, %p60
      %p63 = scmp.ne.s32.totalorder %s48, %s62
      %p64 = scmp.eq.s32.totalorder %s22, 0
      %p65 = por %p63, %p64
      %s67 = sadd.s32 %s66, 1
      %p70 = scmp.eq.s32.totalorder %s16, 1
      %p71 = scmp.ne.s32.totalorder %s66, %s68
      %p72 = scmp.eq.s32.totalorder %s16, 0
      %p73 = por %p71, %p72
      %p74 = scmp.ne.s32.totalorder %s66, %s68
      %p75 = scmp.eq.s32.totalorder %s21, 1
      %p76 = por %p74, %p75
      %p77 = scmp.ne.s32.totalorder %s68, %s69
      %p78 = scmp.eq.s32.totalorder %s21, 0
      %p79 = por %p77, %p78
      %p80 = scmp.ne.s32.totalorder %s68, %s69
      %p81 = scmp.eq.s32.totalorder %s22, 1
      %p82 = por %p80, %p81
      %p84 = scmp.ne.s32.totalorder %s69, %s83
      %p85 = scmp.eq.s32.totalorder %s22, 0
      %p86 = por %p84, %p85
      %s87 = ssub.s32 %s16, %s23
      %p88 = scmp.eq.s32.totalorder %s87, 0
      %s90 = sadd.s32 %s89, 1
      %s91 = scalar_select %p88, %s89, %s90
      %p94 = pneg %p88
      %p95 = scmp.eq.s32.totalorder %s16, 1
      %p96 = por %p94, %p95
      %p97 = scmp.ne.s32.totalorder %s89, %s92
      %p98 = scmp.eq.s32.totalorder %s16, 0
      %p99 = por %p97, %p98
      %p100 = scmp.ne.s32.totalorder %s89, %s92
      %p101 = scmp.eq.s32.totalorder %s21, 1
      %p102 = por %p100, %p101
      %p103 = scmp.ne.s32.totalorder %s92, %s93
      %p104 = scmp.eq.s32.totalorder %s21, 0
      %p105 = por %p103, %p104
      %p106 = scmp.ne.s32.totalorder %s92, %s93
      %p107 = scmp.eq.s32.totalorder %s22, 1
      %p108 = por %p106, %p107
      %p110 = scmp.ne.s32.totalorder %s93, %s109
      %p111 = scmp.eq.s32.totalorder %s22, 0
      %p112 = por %p110, %p111
      %s113 = ssub.s32 %s16, %s23
      %p114 = scmp.eq.s32.totalorder %s113, 0
      %s116 = sadd.s32 %s115, 1
      %s117 = scalar_select %p114, %s115, %s116
      %p120 = pneg %p114
      %p121 = scmp.eq.s32.totalorder %s16, 1
      %p122 = por %p120, %p121
      %p123 = scmp.ne.s32.totalorder %s115, %s118
      %p124 = scmp.eq.s32.totalorder %s16, 0
      %p125 = por %p123, %p124
      %p126 = scmp.ne.s32.totalorder %s115, %s118
      %p127 = scmp.eq.s32.totalorder %s21, 1
      %p128 = por %p126, %p127
      %p129 = scmp.ne.s32.totalorder %s118, %s119
      %p130 = scmp.eq.s32.totalorder %s21, 0
      %p131 = por %p129, %p130
      %p132 = scmp.ne.s32.totalorder %s118, %s119
      %p133 = scmp.eq.s32.totalorder %s22, 1
      %p134 = por %p132, %p133
      %p136 = scmp.ne.s32.totalorder %s119, %s135
      %p137 = scmp.eq.s32.totalorder %s22, 0
      %p138 = por %p136, %p137
      %s140 = sadd.s32 %s139, 1
      %p143 = scmp.eq.s32.totalorder %s16, 1
      %p144 = scmp.ne.s32.totalorder %s139, %s141
      %p145 = scmp.eq.s32.totalorder %s16, 0
      %p146 = por %p144, %p145
      %p147 = scmp.ne.s32.totalorder %s139, %s141
      %p148 = scmp.eq.s32.totalorder %s21, 1
      %p149 = por %p147, %p148
      %p150 = scmp.ne.s32.totalorder %s141, %s142
      %p151 = scmp.eq.s32.totalorder %s21, 0
      %p152 = por %p150, %p151
      %p153 = scmp.ne.s32.totalorder %s141, %s142
      %p154 = scmp.eq.s32.totalorder %s22, 1
      %p155 = por %p153, %p154
      %p157 = scmp.ne.s32.totalorder %s142, %s156
      %p158 = scmp.eq.s32.totalorder %s22, 0
      %p159 = por %p157, %p158
      %s161 = sadd.s32 %s160, 1
      %p164 = scmp.eq.s32.totalorder %s16, 1
      %p165 = scmp.ne.s32.totalorder %s160, %s162
      %p166 = scmp.eq.s32.totalorder %s16, 0
      %p167 = por %p165, %p166
      %p168 = scmp.ne.s32.totalorder %s160, %s162
      %p169 = scmp.eq.s32.totalorder %s21, 1
      %p170 = por %p168, %p169
      %p171 = scmp.ne.s32.totalorder %s162, %s163
      %p172 = scmp.eq.s32.totalorder %s21, 0
      %p173 = por %p171, %p172
      %p174 = scmp.ne.s32.totalorder %s162, %s163
      %p175 = scmp.eq.s32.totalorder %s22, 1
      %p176 = por %p174, %p175
      %p178 = scmp.ne.s32.totalorder %s163, %s177
      %p179 = scmp.eq.s32.totalorder %s22, 0
      %p180 = por %p178, %p179
      %s182 = sadd.s32 %s181, 1
      %p185 = scmp.eq.s32.totalorder %s16, 1
      %p186 = scmp.ne.s32.totalorder %s181, %s183
      %p187 = scmp.eq.s32.totalorder %s16, 0
      %p188 = por %p186, %p187
      %p189 = scmp.ne.s32.totalorder %s181, %s183
      %p190 = scmp.eq.s32.totalorder %s21, 1
      %p191 = por %p189, %p190
      %p192 = scmp.ne.s32.totalorder %s183, %s184
      %p193 = scmp.eq.s32.totalorder %s21, 0
      %p194 = por %p192, %p193
      %p195 = scmp.ne.s32.totalorder %s183, %s184
      %p196 = scmp.eq.s32.totalorder %s22, 1
      %p197 = por %p195, %p196
      %p199 = scmp.ne.s32.totalorder %s184, %s198
      %p200 = scmp.eq.s32.totalorder %s22, 0
      %p201 = por %p199, %p200
      %p202 = scmp.le.s32.totalorder 1, %s16
      %p203 = scmp.lt.s32.totalorder %s16, 3
      %p204 = pnand %p202, %p203
      %p205 = pneg %p204
      // Predicated region
      $region9: #{tpu_custom_call.1} parent=5 // pred_check
        _
      $region10: #{tpu_custom_call.1} parent=5 // pred_check_branch
        %207 = sbr.rel (%p204) target = $region12
      $region11: #{tpu_custom_call.1} parent=5 // pred_region
        %s208 = ssub.s32 %s16, 1
        // Predicated region
        $region13: #{tpu_custom_call.1} parent=11 // pred_check
          %p209 = pneg %p37
        $region14: #{tpu_custom_call.1} parent=11 // pred_check_branch
          %211 = sbr.rel (%p209) target = $region16
        $region15: #{tpu_custom_call.1} parent=11 // pred_region
          %s213 = ssub.s32 128, 128
          %214 = vsyncadd [#allocation4], %s213
          %s216 = sshll.u32 [#allocation3], 4
          %s217 = int_to_ptr.vmem [resolvable:$true] %s216
          %219 = dma.hbm_to_vmem [thread:$0]  %s0, 128, %s217, [#allocation4]
        $region16: #{tpu_custom_call.1} parent=11 // pred_fallthru
          _
        // Predicated region
        $region17: #{tpu_custom_call.1} parent=11 // pred_check
          %p220 = pneg %p58
        $region18: #{tpu_custom_call.1} parent=11 // pred_check_branch
          %222 = sbr.rel (%p220) target = $region20
        $region19: #{tpu_custom_call.1} parent=11 // pred_region
          %s224 = ssub.s32 2048, 2048
          %225 = vsyncadd [#allocation7], %s224
          %s226 = sshll.u32 [#allocation6], 4
          %s227 = int_to_ptr.vmem [resolvable:$true] %s226
          %232 = dma.hbm_to_vmem [thread:$0]  %s1, 2048, %s227, [#allocation7], 128, 128, 8
        $region20: #{tpu_custom_call.1} parent=11 // pred_fallthru
          _
        // Predicated region
        $region21: #{tpu_custom_call.1} parent=11 // pred_check
          %p233 = pneg %p79
        $region22: #{tpu_custom_call.1} parent=11 // pred_check_branch
          %235 = sbr.rel (%p233) target = $region24
        $region23: #{tpu_custom_call.1} parent=11 // pred_region
          _
        $region24: #{tpu_custom_call.1} parent=11 // pred_fallthru
          _
        // Predicated region
        $region25: #{tpu_custom_call.1} parent=11 // pred_check
          %p236 = pneg %p152
        $region26: #{tpu_custom_call.1} parent=11 // pred_check_branch
          %238 = sbr.rel (%p236) target = $region28
        $region27: #{tpu_custom_call.1} parent=11 // pred_region
          %s240 = ssub.s32 2048, 2048
          %241 = vsyncadd [#allocation7], %s240
          %s242 = sshll.u32 [#allocation9], 4
          %s243 = int_to_ptr.vmem [resolvable:$true] %s242
          %248 = dma.hbm_to_vmem [thread:$0]  %s5, 2048, %s243, [#allocation7], 128, 128, 8
        $region28: #{tpu_custom_call.1} parent=11 // pred_fallthru
          _
        // Predicated region
        $region29: #{tpu_custom_call.1} parent=11 // pred_check
          %p249 = pneg %p173
        $region30: #{tpu_custom_call.1} parent=11 // pred_check_branch
          %251 = sbr.rel (%p249) target = $region32
        $region31: #{tpu_custom_call.1} parent=11 // pred_region
          _
        $region32: #{tpu_custom_call.1} parent=11 // pred_fallthru
          _
      $region12: #{tpu_custom_call.1} parent=5 // pred_fallthru
        _
      %p252 = scmp.lt.s32.totalorder %s16, 2
      // Predicated region
      $region33: #{tpu_custom_call.1} parent=5 // pred_check
        %p253 = pneg %p252
      $region34: #{tpu_custom_call.1} parent=5 // pred_check_branch
        %255 = sbr.rel (%p253) target = $region36
      $region35: #{tpu_custom_call.1} parent=5 // pred_region
        // Predicated region
        $region37: #{tpu_custom_call.1} parent=35 // pred_check
          %p256 = pneg %p99
        $region38: #{tpu_custom_call.1} parent=35 // pred_check_branch
          %258 = sbr.rel (%p256) target = $region40
        $region39: #{tpu_custom_call.1} parent=35 // pred_region
          %s259 = sand.u32 %s16, 1
          %s260 = scalar_lea.sflag [#allocation4], %s259
          %s261 = sand.u32 %s89, 1
          %s262 = smul.addr %s261, 128
          %s263 = scalar_lea.vmem [#allocation8], %s262
          %s265 = ssub.s32 2048, 2048
          %266 = vsyncadd %s260, %s265
          %s267 = smul.addr %s16, 16
          %s268 = smul.addr %s267, 128
          %s269 = scalar_lea.hbm %s3, %s268
          %s270 = sshll.u32 %s263, 4
          %s271 = int_to_ptr.vmem [resolvable:$true] %s270
          %276 = dma.hbm_to_vmem [thread:$0]  %s269, 2048, %s271, %s260, 128, 128, 8
        $region40: #{tpu_custom_call.1} parent=35 // pred_fallthru
          _
        // Predicated region
        $region41: #{tpu_custom_call.1} parent=35 // pred_check
          %p277 = pneg %p125
        $region42: #{tpu_custom_call.1} parent=35 // pred_check_branch
          %279 = sbr.rel (%p277) target = $region44
        $region43: #{tpu_custom_call.1} parent=35 // pred_region
          %p280 = scmp.lt.s32.totalorder %s16, 1
          %s281 = scalar_select %p280, %s16, 1
          %s282 = scalar_lea.vmem %s4, %s281
        $region44: #{tpu_custom_call.1} parent=35 // pred_fallthru
          _
      $region36: #{tpu_custom_call.1} parent=5 // pred_fallthru
        _
      %p283 = scmp.le.s32.totalorder 1, %s16
      %p284 = scmp.lt.s32.totalorder %s16, 3
      %p285 = pnand %p283, %p284
      %p286 = pneg %p285
      // Predicated region
      $region45: #{tpu_custom_call.1} parent=5 // pred_check
        _
      $region46: #{tpu_custom_call.1} parent=5 // pred_check_branch
        %288 = sbr.rel (%p285) target = $region48
      $region47: #{tpu_custom_call.1} parent=5 // pred_region
        %s289 = ssub.s32 %s16, 1
        // Predicated region
        $region49: #{tpu_custom_call.1} parent=47 // pred_check
          %p290 = pneg %p37
        $region50: #{tpu_custom_call.1} parent=47 // pred_check_branch
          %292 = sbr.rel (%p290) target = $region52
        $region51: #{tpu_custom_call.1} parent=47 // pred_region
          %293 = dma.done [#allocation4], 128
        $region52: #{tpu_custom_call.1} parent=47 // pred_fallthru
          _
        // Predicated region
        $region53: #{tpu_custom_call.1} parent=47 // pred_check
          %p294 = pneg %p58
        $region54: #{tpu_custom_call.1} parent=47 // pred_check_branch
          %296 = sbr.rel (%p294) target = $region56
        $region55: #{tpu_custom_call.1} parent=47 // pred_region
          %297 = dma.done [#allocation7], 2048
        $region56: #{tpu_custom_call.1} parent=47 // pred_fallthru
          _
        %s298 = sand.u32 %s21, 1
        %s299 = scalar_lea.sflag [#allocation4], %s298
        %s300 = sand.u32 %s92, 1
        %s301 = smul.addr %s300, 128
        %s302 = scalar_lea.vmem [#allocation8], %s301
        // Predicated region
        $region57: #{tpu_custom_call.1} parent=47 // pred_check
          %p303 = pneg %p105
        $region58: #{tpu_custom_call.1} parent=47 // pred_check_branch
          %305 = sbr.rel (%p303) target = $region60
        $region59: #{tpu_custom_call.1} parent=47 // pred_region
          %306 = dma.done %s299, 2048
        $region60: #{tpu_custom_call.1} parent=47 // pred_fallthru
          _
        // Predicated region
        $region61: #{tpu_custom_call.1} parent=47 // pred_check
          %p307 = pneg %p152
        $region62: #{tpu_custom_call.1} parent=47 // pred_check_branch
          %309 = sbr.rel (%p307) target = $region64
        $region63: #{tpu_custom_call.1} parent=47 // pred_region
          %310 = dma.done [#allocation7], 2048
        $region64: #{tpu_custom_call.1} parent=47 // pred_fallthru
          _
        %p311 = pneg %p37
        %p312 = pneg %p34
        %p313 = pneg %p58
        %p314 = pneg %p55
        %p315 = pneg %p79
        %p316 = pneg %p76
        %s317 = sand.u32 %s21, 1
        %s318 = scalar_lea.sflag [#allocation4], %s317
        %s319 = sand.u32 %s92, 1
        %s320 = smul.addr %s319, 128
        %s321 = scalar_lea.vmem [#allocation8], %s320
        %p322 = pneg %p105
        %p323 = pneg %p102
        %p324 = scmp.lt.s32.totalorder %s21, 1
        %s325 = scalar_select %p324, %s21, 1
        %s326 = scalar_lea.vmem %s4, %s325
        %p327 = pneg %p131
        %p328 = pneg %p128
        %p329 = pneg %p152
        %p330 = pneg %p149
        %p331 = pneg %p173
        %p332 = pneg %p170
        %p333 = pneg %p194
        %p334 = pneg %p191
        %p335 = scmp.lt.s32.totalorder %s21, 1
        %s336 = scalar_select %p335, %s21, 1
        %s337 = scalar_lea.vmem %s4, %s336
        %p338 = scmp.eq.s32.totalorder %s21, 0
        // Predicated region
        $region65: #{tpu_custom_call.1} parent=47 // pred_check
          %p339 = pneg %p338
        $region66: #{tpu_custom_call.1} parent=47 // pred_check_branch
          %341 = sbr.rel (%p339) target = $region68
        $region67: #{tpu_custom_call.1} parent=47 // pred_region
          %v342 = vld [vmem:[#allocation3] sm:$0xff]
          %v343 = vld [vmem:[#allocation6] sm:$0xff]
          %v344 = vld [vmem:[#allocation6 + $0x8] sm:$0xff]
          %v345 = vld [vmem:[#allocation6 + $0x10] sm:$0xff]
          %v346 = vld [vmem:[#allocation6 + $0x18] sm:$0xff]
          %v347 = vld [vmem:[#allocation6 + $0x20] sm:$0xff]
          %v348 = vld [vmem:[#allocation6 + $0x28] sm:$0xff]
          %v349 = vld [vmem:[#allocation6 + $0x30] sm:$0xff]
          %v350 = vld [vmem:[#allocation6 + $0x38] sm:$0xff]
          %v351 = vld [vmem:[#allocation6 + $0x40] sm:$0xff]
          %v352 = vld [vmem:[#allocation6 + $0x48] sm:$0xff]
          %v353 = vld [vmem:[#allocation6 + $0x50] sm:$0xff]
          %v354 = vld [vmem:[#allocation6 + $0x58] sm:$0xff]
          %v355 = vld [vmem:[#allocation6 + $0x60] sm:$0xff]
          %v356 = vld [vmem:[#allocation6 + $0x68] sm:$0xff]
          %v357 = vld [vmem:[#allocation6 + $0x70] sm:$0xff]
          %v358 = vld [vmem:[#allocation6 + $0x78] sm:$0xff]
          %v359 = vld [vmem:[%s2] sm:$0x1]
          %v361 = vlaneseq
          %v362 = vshrl.u32 %v361, 7
          %v363 = vsub.s32 0, %v362
          %v364 = vrot.slane %v359, %v363
          %366 = vmatprep.subr.mxu0 0.0
          %v367 = vand.u32 %v343, 4294901760
          %368 = vmatpush1.msra.mxu0 %v367
          %369 = vmatprep.subr.mxu0 0.0
          %v370 = vand.u32 %v344, 4294901760
          %371 = vmatpush1.msra.mxu0 %v370
          %372 = vmatprep.subr.mxu0 0.0
          %v373 = vand.u32 %v345, 4294901760
          %374 = vmatpush1.msra.mxu0 %v373
          %375 = vmatprep.subr.mxu0 0.0
          %v376 = vand.u32 %v346, 4294901760
          %377 = vmatpush1.msra.mxu0 %v376
          %378 = vmatprep.subr.mxu0 0.0
          %v379 = vand.u32 %v347, 4294901760
          %380 = vmatpush1.msra.mxu0 %v379
          %381 = vmatprep.subr.mxu0 0.0
          %v382 = vand.u32 %v348, 4294901760
          %383 = vmatpush1.msra.mxu0 %v382
          %384 = vmatprep.subr.mxu0 0.0
          %v385 = vand.u32 %v349, 4294901760
          %386 = vmatpush1.msra.mxu0 %v385
          %387 = vmatprep.subr.mxu0 0.0
          %v388 = vand.u32 %v350, 4294901760
          %389 = vmatpush1.msra.mxu0 %v388
          %390 = vmatprep.subr.mxu0 0.0
          %v391 = vand.u32 %v351, 4294901760
          %392 = vmatpush1.msra.mxu0 %v391
          %393 = vmatprep.subr.mxu0 0.0
          %v394 = vand.u32 %v352, 4294901760
          %395 = vmatpush1.msra.mxu0 %v394
          %396 = vmatprep.subr.mxu0 0.0
          %v397 = vand.u32 %v353, 4294901760
          %398 = vmatpush1.msra.mxu0 %v397
          %399 = vmatprep.subr.mxu0 0.0
          %v400 = vand.u32 %v354, 4294901760
          %401 = vmatpush1.msra.mxu0 %v400
          %402 = vmatprep.subr.mxu0 0.0
          %v403 = vand.u32 %v355, 4294901760
          %404 = vmatpush1.msra.mxu0 %v403
          %405 = vmatprep.subr.mxu0 0.0
          %v406 = vand.u32 %v356, 4294901760
          %407 = vmatpush1.msra.mxu0 %v406
          %408 = vmatprep.subr.mxu0 0.0
          %v409 = vand.u32 %v357, 4294901760
          %410 = vmatpush1.msra.mxu0 %v409
          %411 = vmatprep.subr.mxu0 0.0
          %v412 = vand.u32 %v358, 4294901760
          %413 = vmatpush1.msra.mxu0 %v412
          %414 = vmatprep.subr.mxu0 0.0
          %415 = vmatpush1.msra.mxu0 0.0
          %416 = vmatprep.subr.mxu0 0.0
          %417 = vmatpush1.msra.mxu0 0.0
          %418 = vmatprep.subr.mxu0 0.0
          %419 = vmatpush1.msra.mxu0 0.0
          %420 = vmatprep.subr.mxu0 0.0
          %421 = vmatpush1.msra.mxu0 0.0
          %422 = vmatprep.subr.mxu0 0.0
          %423 = vmatpush1.msra.mxu0 0.0
          %424 = vmatprep.subr.mxu0 0.0
          %425 = vmatpush1.msra.mxu0 0.0
          %426 = vmatprep.subr.mxu0 0.0
          %427 = vmatpush1.msra.mxu0 0.0
          %428 = vmatprep.subr.mxu0 0.0
          %429 = vmatpush1.msra.mxu0 0.0
          %430 = vmatprep.subr.mxu0 0.0
          %431 = vmatpush1.msra.mxu0 0.0
          %432 = vmatprep.subr.mxu0 0.0
          %433 = vmatpush1.msra.mxu0 0.0
          %434 = vmatprep.subr.mxu0 0.0
          %435 = vmatpush1.msra.mxu0 0.0
          %436 = vmatprep.subr.mxu0 0.0
          %437 = vmatpush1.msra.mxu0 0.0
          %438 = vmatprep.subr.mxu0 0.0
          %439 = vmatpush1.msra.mxu0 0.0
          %440 = vmatprep.subr.mxu0 0.0
          %441 = vmatpush1.msra.mxu0 0.0
          %442 = vmatprep.subr.mxu0 0.0
          %443 = vmatpush1.msra.mxu0 0.0
          %444 = vmatprep.subr.mxu0 0.0
          %445 = vmatpush1.msra.mxu0 0.0
          %446 = vmatprep.mubr.f32.mxu0 0.0
          %v447 = vand.u32 %v342, 4294901760
          %v448 = vsub.f32 %v342, %v447
          %v449 = vand.u32 %v448, 4294901760
          %v450 = vsub.f32 %v448, %v449
          %v451 = vand.u32 %v450, 4294901760
          %452 = vmatmul.mubr.f32.gmra.mrb[0].mxu0 %v451
          %v453 = vpop.f32.mrb[0].mxu0
          %v454 = vadd.f32 %v364, %v453
          %v455 = vpop.f32.mrb[0].mxu0
          %456 = vdwg.mxu0
          %457 = vmatprep.subr.mxu0 0.0
          %v458 = vand.u32 %v343, 4294901760
          %v459 = vsub.f32 %v343, %v458
          %v460 = vand.u32 %v459, 4294901760
          %v461 = vsub.f32 %v459, %v460
          %v462 = vand.u32 %v461, 4294901760
          %463 = vmatpush1.msra.mxu0 %v462
          %464 = vmatprep.subr.mxu0 0.0
          %v465 = vand.u32 %v344, 4294901760
          %v466 = vsub.f32 %v344, %v465
          %v467 = vand.u32 %v466, 4294901760
          %v468 = vsub.f32 %v466, %v467
          %v469 = vand.u32 %v468, 4294901760
          %470 = vmatpush1.msra.mxu0 %v469
          %471 = vmatprep.subr.mxu0 0.0
          %v472 = vand.u32 %v345, 4294901760
          %v473 = vsub.f32 %v345, %v472
          %v474 = vand.u32 %v473, 4294901760
          %v475 = vsub.f32 %v473, %v474
          %v476 = vand.u32 %v475, 4294901760
          %477 = vmatpush1.msra.mxu0 %v476
          %478 = vmatprep.subr.mxu0 0.0
          %v479 = vand.u32 %v346, 4294901760
          %v480 = vsub.f32 %v346, %v479
          %v481 = vand.u32 %v480, 4294901760
          %v482 = vsub.f32 %v480, %v481
          %v483 = vand.u32 %v482, 4294901760
          %484 = vmatpush1.msra.mxu0 %v483
          %485 = vmatprep.subr.mxu0 0.0
          %v486 = vand.u32 %v347, 4294901760
          %v487 = vsub.f32 %v347, %v486
          %v488 = vand.u32 %v487, 4294901760
          %v489 = vsub.f32 %v487, %v488
          %v490 = vand.u32 %v489, 4294901760
          %491 = vmatpush1.msra.mxu0 %v490
          %492 = vmatprep.subr.mxu0 0.0
          %v493 = vand.u32 %v348, 4294901760
          %v494 = vsub.f32 %v348, %v493
          %v495 = vand.u32 %v494, 4294901760
          %v496 = vsub.f32 %v494, %v495
          %v497 = vand.u32 %v496, 4294901760
          %498 = vmatpush1.msra.mxu0 %v497
          %499 = vmatprep.subr.mxu0 0.0
          %v500 = vand.u32 %v349, 4294901760
          %v501 = vsub.f32 %v349, %v500
          %v502 = vand.u32 %v501, 4294901760
          %v503 = vsub.f32 %v501, %v502
          %v504 = vand.u32 %v503, 4294901760
          %505 = vmatpush1.msra.mxu0 %v504
          %506 = vmatprep.subr.mxu0 0.0
          %v507 = vand.u32 %v350, 4294901760
          %v508 = vsub.f32 %v350, %v507
          %v509 = vand.u32 %v508, 4294901760
          %v510 = vsub.f32 %v508, %v509
          %v511 = vand.u32 %v510, 4294901760
          %512 = vmatpush1.msra.mxu0 %v511
          %513 = vmatprep.subr.mxu0 0.0
          %v514 = vand.u32 %v351, 4294901760
          %v515 = vsub.f32 %v351, %v514
          %v516 = vand.u32 %v515, 4294901760
          %v517 = vsub.f32 %v515, %v516
          %v518 = vand.u32 %v517, 4294901760
          %519 = vmatpush1.msra.mxu0 %v518
          %520 = vmatprep.subr.mxu0 0.0
          %v521 = vand.u32 %v352, 4294901760
          %v522 = vsub.f32 %v352, %v521
          %v523 = vand.u32 %v522, 4294901760
          %v524 = vsub.f32 %v522, %v523
          %v525 = vand.u32 %v524, 4294901760
          %526 = vmatpush1.msra.mxu0 %v525
          %527 = vmatprep.subr.mxu0 0.0
          %v528 = vand.u32 %v353, 4294901760
          %v529 = vsub.f32 %v353, %v528
          %v530 = vand.u32 %v529, 4294901760
          %v531 = vsub.f32 %v529, %v530
          %v532 = vand.u32 %v531, 4294901760
          %533 = vmatpush1.msra.mxu0 %v532
          %534 = vmatprep.subr.mxu0 0.0
          %v535 = vand.u32 %v354, 4294901760
          %v536 = vsub.f32 %v354, %v535
          %v537 = vand.u32 %v536, 4294901760
          %v538 = vsub.f32 %v536, %v537
          %v539 = vand.u32 %v538, 4294901760
          %540 = vmatpush1.msra.mxu0 %v539
          %541 = vmatprep.subr.mxu0 0.0
          %v542 = vand.u32 %v355, 4294901760
          %v543 = vsub.f32 %v355, %v542
          %v544 = vand.u32 %v543, 4294901760
          %v545 = vsub.f32 %v543, %v544
          %v546 = vand.u32 %v545, 4294901760
          %547 = vmatpush1.msra.mxu0 %v546
          %548 = vmatprep.subr.mxu0 0.0
          %v549 = vand.u32 %v356, 4294901760
          %v550 = vsub.f32 %v356, %v549
          %v551 = vand.u32 %v550, 4294901760
          %v552 = vsub.f32 %v550, %v551
          %v553 = vand.u32 %v552, 4294901760
          %554 = vmatpush1.msra.mxu0 %v553
          %555 = vmatprep.subr.mxu0 0.0
          %v556 = vand.u32 %v357, 4294901760
          %v557 = vsub.f32 %v357, %v556
          %v558 = vand.u32 %v557, 4294901760
          %v559 = vsub.f32 %v557, %v558
          %v560 = vand.u32 %v559, 4294901760
          %561 = vmatpush1.msra.mxu0 %v560
          %562 = vmatprep.subr.mxu0 0.0
          %v563 = vand.u32 %v358, 4294901760
          %v564 = vsub.f32 %v358, %v563
          %v565 = vand.u32 %v564, 4294901760
          %v566 = vsub.f32 %v564, %v565
          %v567 = vand.u32 %v566, 4294901760
          %568 = vmatpush1.msra.mxu0 %v567
          %569 = vmatprep.subr.mxu0 0.0
          %570 = vmatpush1.msra.mxu0 0.0
          %571 = vmatprep.subr.mxu0 0.0
          %572 = vmatpush1.msra.mxu0 0.0
          %573 = vmatprep.subr.mxu0 0.0
          %574 = vmatpush1.msra.mxu0 0.0
          %575 = vmatprep.subr.mxu0 0.0
          %576 = vmatpush1.msra.mxu0 0.0
          %577 = vmatprep.subr.mxu0 0.0
          %578 = vmatpush1.msra.mxu0 0.0
          %579 = vmatprep.subr.mxu0 0.0
          %580 = vmatpush1.msra.mxu0 0.0
          %581 = vmatprep.subr.mxu0 0.0
          %582 = vmatpush1.msra.mxu0 0.0
          %583 = vmatprep.subr.mxu0 0.0
          %584 = vmatpush1.msra.mxu0 0.0
          %585 = vmatprep.subr.mxu0 0.0
          %586 = vmatpush1.msra.mxu0 0.0
          %587 = vmatprep.subr.mxu0 0.0
          %588 = vmatpush1.msra.mxu0 0.0
          %589 = vmatprep.subr.mxu0 0.0
          %590 = vmatpush1.msra.mxu0 0.0
          %591 = vmatprep.subr.mxu0 0.0
          %592 = vmatpush1.msra.mxu0 0.0
          %593 = vmatprep.subr.mxu0 0.0
          %594 = vmatpush1.msra.mxu0 0.0
          %595 = vmatprep.subr.mxu0 0.0
          %596 = vmatpush1.msra.mxu0 0.0
          %597 = vmatprep.subr.mxu0 0.0
          %598 = vmatpush1.msra.mxu0 0.0
          %599 = vmatprep.subr.mxu0 0.0
          %600 = vmatpush1.msra.mxu0 0.0
          %601 = vmatprep.mubr.f32.mxu0 0.0
          %v602 = vand.u32 %v342, 4294901760
          %603 = vmatmul.mubr.f32.gmra.mrb[0].mxu0 %v602
          %v604 = vpop.f32.mrb[0].mxu0
          %v605 = vadd.f32 %v454, %v604
          %v606 = vpop.f32.mrb[0].mxu0
          %607 = vdwg.mxu0
          %608 = vmatprep.subr.mxu0 0.0
          %v609 = vand.u32 %v343, 4294901760
          %v610 = vsub.f32 %v343, %v609
          %611 = vmatpush1.msra.mxu0 %v610
          %612 = vmatprep.subr.mxu0 0.0
          %v613 = vand.u32 %v344, 4294901760
          %v614 = vsub.f32 %v344, %v613
          %615 = vmatpush1.msra.mxu0 %v614
          %616 = vmatprep.subr.mxu0 0.0
          %v617 = vand.u32 %v345, 4294901760
          %v618 = vsub.f32 %v345, %v617
          %619 = vmatpush1.msra.mxu0 %v618
          %620 = vmatprep.subr.mxu0 0.0
          %v621 = vand.u32 %v346, 4294901760
          %v622 = vsub.f32 %v346, %v621
          %623 = vmatpush1.msra.mxu0 %v622
          %624 = vmatprep.subr.mxu0 0.0
          %v625 = vand.u32 %v347, 4294901760
          %v626 = vsub.f32 %v347, %v625
          %627 = vmatpush1.msra.mxu0 %v626
          %628 = vmatprep.subr.mxu0 0.0
          %v629 = vand.u32 %v348, 4294901760
          %v630 = vsub.f32 %v348, %v629
          %631 = vmatpush1.msra.mxu0 %v630
          %632 = vmatprep.subr.mxu0 0.0
          %v633 = vand.u32 %v349, 4294901760
          %v634 = vsub.f32 %v349, %v633
          %635 = vmatpush1.msra.mxu0 %v634
          %636 = vmatprep.subr.mxu0 0.0
          %v637 = vand.u32 %v350, 4294901760
          %v638 = vsub.f32 %v350, %v637
          %639 = vmatpush1.msra.mxu0 %v638
          %640 = vmatprep.subr.mxu0 0.0
          %v641 = vand.u32 %v351, 4294901760
          %v642 = vsub.f32 %v351, %v641
          %643 = vmatpush1.msra.mxu0 %v642
          %644 = vmatprep.subr.mxu0 0.0
          %v645 = vand.u32 %v352, 4294901760
          %v646 = vsub.f32 %v352, %v645
          %647 = vmatpush1.msra.mxu0 %v646
          %648 = vmatprep.subr.mxu0 0.0
          %v649 = vand.u32 %v353, 4294901760
          %v650 = vsub.f32 %v353, %v649
          %651 = vmatpush1.msra.mxu0 %v650
          %652 = vmatprep.subr.mxu0 0.0
          %v653 = vand.u32 %v354, 4294901760
          %v654 = vsub.f32 %v354, %v653
          %655 = vmatpush1.msra.mxu0 %v654
          %656 = vmatprep.subr.mxu0 0.0
          %v657 = vand.u32 %v355, 4294901760
          %v658 = vsub.f32 %v355, %v657
          %659 = vmatpush1.msra.mxu0 %v658
          %660 = vmatprep.subr.mxu0 0.0
          %v661 = vand.u32 %v356, 4294901760
          %v662 = vsub.f32 %v356, %v661
          %663 = vmatpush1.msra.mxu0 %v662
          %664 = vmatprep.subr.mxu0 0.0
          %v665 = vand.u32 %v357, 4294901760
          %v666 = vsub.f32 %v357, %v665
          %667 = vmatpush1.msra.mxu0 %v666
          %668 = vmatprep.subr.mxu0 0.0
          %v669 = vand.u32 %v358, 4294901760
          %v670 = vsub.f32 %v358, %v669
          %671 = vmatpush1.msra.mxu0 %v670
          %672 = vmatprep.subr.mxu0 0.0
          %673 = vmatpush1.msra.mxu0 0.0
          %674 = vmatprep.subr.mxu0 0.0
          %675 = vmatpush1.msra.mxu0 0.0
          %676 = vmatprep.subr.mxu0 0.0
          %677 = vmatpush1.msra.mxu0 0.0
          %678 = vmatprep.subr.mxu0 0.0
          %679 = vmatpush1.msra.mxu0 0.0
          %680 = vmatprep.subr.mxu0 0.0
          %681 = vmatpush1.msra.mxu0 0.0
          %682 = vmatprep.subr.mxu0 0.0
          %683 = vmatpush1.msra.mxu0 0.0
          %684 = vmatprep.subr.mxu0 0.0
          %685 = vmatpush1.msra.mxu0 0.0
          %686 = vmatprep.subr.mxu0 0.0
          %687 = vmatpush1.msra.mxu0 0.0
          %688 = vmatprep.subr.mxu0 0.0
          %689 = vmatpush1.msra.mxu0 0.0
          %690 = vmatprep.subr.mxu0 0.0
          %691 = vmatpush1.msra.mxu0 0.0
          %692 = vmatprep.subr.mxu0 0.0
          %693 = vmatpush1.msra.mxu0 0.0
          %694 = vmatprep.subr.mxu0 0.0
          %695 = vmatpush1.msra.mxu0 0.0
          %696 = vmatprep.subr.mxu0 0.0
          %697 = vmatpush1.msra.mxu0 0.0
          %698 = vmatprep.subr.mxu0 0.0
          %699 = vmatpush1.msra.mxu0 0.0
          %700 = vmatprep.subr.mxu0 0.0
          %701 = vmatpush1.msra.mxu0 0.0
          %702 = vmatprep.subr.mxu0 0.0
          %703 = vmatpush1.msra.mxu0 0.0
          %704 = vmatprep.mubr.f32.mxu0 0.0
          %v705 = vand.u32 %v342, 4294901760
          %v706 = vsub.f32 %v342, %v705
          %707 = vmatmul.mubr.f32.gmra.mrb[0].mxu0 %v706
          %v708 = vpop.f32.mrb[0].mxu0
          %v709 = vadd.f32 %v605, %v708
          %v710 = vpop.f32.mrb[0].mxu0
          %711 = vdwg.mxu0
          %712 = vmatprep.subr.mxu0 0.0
          %v713 = vand.u32 %v343, 4294901760
          %714 = vmatpush1.msra.mxu0 %v713
          %715 = vmatprep.subr.mxu0 0.0
          %v716 = vand.u32 %v344, 4294901760
          %717 = vmatpush1.msra.mxu0 %v716
          %718 = vmatprep.subr.mxu0 0.0
          %v719 = vand.u32 %v345, 4294901760
          %720 = vmatpush1.msra.mxu0 %v719
          %721 = vmatprep.subr.mxu0 0.0
          %v722 = vand.u32 %v346, 4294901760
          %723 = vmatpush1.msra.mxu0 %v722
          %724 = vmatprep.subr.mxu0 0.0
          %v725 = vand.u32 %v347, 4294901760
          %726 = vmatpush1.msra.mxu0 %v725
          %727 = vmatprep.subr.mxu0 0.0
          %v728 = vand.u32 %v348, 4294901760
          %729 = vmatpush1.msra.mxu0 %v728
          %730 = vmatprep.subr.mxu0 0.0
          %v731 = vand.u32 %v349, 4294901760
          %732 = vmatpush1.msra.mxu0 %v731
          %733 = vmatprep.subr.mxu0 0.0
          %v734 = vand.u32 %v350, 4294901760
          %735 = vmatpush1.msra.mxu0 %v734
          %736 = vmatprep.subr.mxu0 0.0
          %v737 = vand.u32 %v351, 4294901760
          %738 = vmatpush1.msra.mxu0 %v737
          %739 = vmatprep.subr.mxu0 0.0
          %v740 = vand.u32 %v352, 4294901760
          %741 = vmatpush1.msra.mxu0 %v740
          %742 = vmatprep.subr.mxu0 0.0
          %v743 = vand.u32 %v353, 4294901760
          %744 = vmatpush1.msra.mxu0 %v743
          %745 = vmatprep.subr.mxu0 0.0
          %v746 = vand.u32 %v354, 4294901760
          %747 = vmatpush1.msra.mxu0 %v746
          %748 = vmatprep.subr.mxu0 0.0
          %v749 = vand.u32 %v355, 4294901760
          %750 = vmatpush1.msra.mxu0 %v749
          %751 = vmatprep.subr.mxu0 0.0
          %v752 = vand.u32 %v356, 4294901760
          %753 = vmatpush1.msra.mxu0 %v752
          %754 = vmatprep.subr.mxu0 0.0
          %v755 = vand.u32 %v357, 4294901760
          %756 = vmatpush1.msra.mxu0 %v755
          %757 = vmatprep.subr.mxu0 0.0
          %v758 = vand.u32 %v358, 4294901760
          %759 = vmatpush1.msra.mxu0 %v758
          %760 = vmatprep.subr.mxu0 0.0
          %761 = vmatpush1.msra.mxu0 0.0
          %762 = vmatprep.subr.mxu0 0.0
          %763 = vmatpush1.msra.mxu0 0.0
          %764 = vmatprep.subr.mxu0 0.0
          %765 = vmatpush1.msra.mxu0 0.0
          %766 = vmatprep.subr.mxu0 0.0
          %767 = vmatpush1.msra.mxu0 0.0
          %768 = vmatprep.subr.mxu0 0.0
          %769 = vmatpush1.msra.mxu0 0.0
          %770 = vmatprep.subr.mxu0 0.0
          %771 = vmatpush1.msra.mxu0 0.0
          %772 = vmatprep.subr.mxu0 0.0
          %773 = vmatpush1.msra.mxu0 0.0
          %774 = vmatprep.subr.mxu0 0.0
          %775 = vmatpush1.msra.mxu0 0.0
          %776 = vmatprep.subr.mxu0 0.0
          %777 = vmatpush1.msra.mxu0 0.0
          %778 = vmatprep.subr.mxu0 0.0
          %779 = vmatpush1.msra.mxu0 0.0
          %780 = vmatprep.subr.mxu0 0.0
          %781 = vmatpush1.msra.mxu0 0.0
          %782 = vmatprep.subr.mxu0 0.0
          %783 = vmatpush1.msra.mxu0 0.0
          %784 = vmatprep.subr.mxu0 0.0
          %785 = vmatpush1.msra.mxu0 0.0
          %786 = vmatprep.subr.mxu0 0.0
          %787 = vmatpush1.msra.mxu0 0.0
          %788 = vmatprep.subr.mxu0 0.0
          %789 = vmatpush1.msra.mxu0 0.0
          %790 = vmatprep.subr.mxu0 0.0
          %791 = vmatpush1.msra.mxu0 0.0
          %792 = vmatprep.mubr.f32.mxu0 0.0
          %v793 = vand.u32 %v342, 4294901760
          %v794 = vsub.f32 %v342, %v793
          %v795 = vand.u32 %v794, 4294901760
          %796 = vmatmul.mubr.f32.gmra.mrb[0].mxu0 %v795
          %v797 = vpop.f32.mrb[0].mxu0
          %v798 = vadd.f32 %v709, %v797
          %v799 = vpop.f32.mrb[0].mxu0
          %800 = vdwg.mxu0
          %801 = vmatprep.subr.mxu0 0.0
          %v802 = vand.u32 %v343, 4294901760
          %v803 = vsub.f32 %v343, %v802
          %v804 = vand.u32 %v803, 4294901760
          %805 = vmatpush1.msra.mxu0 %v804
          %806 = vmatprep.subr.mxu0 0.0
          %v807 = vand.u32 %v344, 4294901760
          %v808 = vsub.f32 %v344, %v807
          %v809 = vand.u32 %v808, 4294901760
          %810 = vmatpush1.msra.mxu0 %v809
          %811 = vmatprep.subr.mxu0 0.0
          %v812 = vand.u32 %v345, 4294901760
          %v813 = vsub.f32 %v345, %v812
          %v814 = vand.u32 %v813, 4294901760
          %815 = vmatpush1.msra.mxu0 %v814
          %816 = vmatprep.subr.mxu0 0.0
          %v817 = vand.u32 %v346, 4294901760
          %v818 = vsub.f32 %v346, %v817
          %v819 = vand.u32 %v818, 4294901760
          %820 = vmatpush1.msra.mxu0 %v819
          %821 = vmatprep.subr.mxu0 0.0
          %v822 = vand.u32 %v347, 4294901760
          %v823 = vsub.f32 %v347, %v822
          %v824 = vand.u32 %v823, 4294901760
          %825 = vmatpush1.msra.mxu0 %v824
          %826 = vmatprep.subr.mxu0 0.0
          %v827 = vand.u32 %v348, 4294901760
          %v828 = vsub.f32 %v348, %v827
          %v829 = vand.u32 %v828, 4294901760
          %830 = vmatpush1.msra.mxu0 %v829
          %831 = vmatprep.subr.mxu0 0.0
          %v832 = vand.u32 %v349, 4294901760
          %v833 = vsub.f32 %v349, %v832
          %v834 = vand.u32 %v833, 4294901760
          %835 = vmatpush1.msra.mxu0 %v834
          %836 = vmatprep.subr.mxu0 0.0
          %v837 = vand.u32 %v350, 4294901760
          %v838 = vsub.f32 %v350, %v837
          %v839 = vand.u32 %v838, 4294901760
          %840 = vmatpush1.msra.mxu0 %v839
          %841 = vmatprep.subr.mxu0 0.0
          %v842 = vand.u32 %v351, 4294901760
          %v843 = vsub.f32 %v351, %v842
          %v844 = vand.u32 %v843, 4294901760
          %845 = vmatpush1.msra.mxu0 %v844
          %846 = vmatprep.subr.mxu0 0.0
          %v847 = vand.u32 %v352, 4294901760
          %v848 = vsub.f32 %v352, %v847
          %v849 = vand.u32 %v848, 4294901760
          %850 = vmatpush1.msra.mxu0 %v849
          %851 = vmatprep.subr.mxu0 0.0
          %v852 = vand.u32 %v353, 4294901760
          %v853 = vsub.f32 %v353, %v852
          %v854 = vand.u32 %v853, 4294901760
          %855 = vmatpush1.msra.mxu0 %v854
          %856 = vmatprep.subr.mxu0 0.0
          %v857 = vand.u32 %v354, 4294901760
          %v858 = vsub.f32 %v354, %v857
          %v859 = vand.u32 %v858, 4294901760
          %860 = vmatpush1.msra.mxu0 %v859
          %861 = vmatprep.subr.mxu0 0.0
          %v862 = vand.u32 %v355, 4294901760
          %v863 = vsub.f32 %v355, %v862
          %v864 = vand.u32 %v863, 4294901760
          %865 = vmatpush1.msra.mxu0 %v864
          %866 = vmatprep.subr.mxu0 0.0
          %v867 = vand.u32 %v356, 4294901760
          %v868 = vsub.f32 %v356, %v867
          %v869 = vand.u32 %v868, 4294901760
          %870 = vmatpush1.msra.mxu0 %v869
          %871 = vmatprep.subr.mxu0 0.0
          %v872 = vand.u32 %v357, 4294901760
          %v873 = vsub.f32 %v357, %v872
          %v874 = vand.u32 %v873, 4294901760
          %875 = vmatpush1.msra.mxu0 %v874
          %876 = vmatprep.subr.mxu0 0.0
          %v877 = vand.u32 %v358, 4294901760
          %v878 = vsub.f32 %v358, %v877
          %v879 = vand.u32 %v878, 4294901760
          %880 = vmatpush1.msra.mxu0 %v879
          %881 = vmatprep.subr.mxu0 0.0
          %882 = vmatpush1.msra.mxu0 0.0
          %883 = vmatprep.subr.mxu0 0.0
          %884 = vmatpush1.msra.mxu0 0.0
          %885 = vmatprep.subr.mxu0 0.0
          %886 = vmatpush1.msra.mxu0 0.0
          %887 = vmatprep.subr.mxu0 0.0
          %888 = vmatpush1.msra.mxu0 0.0
          %889 = vmatprep.subr.mxu0 0.0
          %890 = vmatpush1.msra.mxu0 0.0
          %891 = vmatprep.subr.mxu0 0.0
          %892 = vmatpush1.msra.mxu0 0.0
          %893 = vmatprep.subr.mxu0 0.0
          %894 = vmatpush1.msra.mxu0 0.0
          %895 = vmatprep.subr.mxu0 0.0
          %896 = vmatpush1.msra.mxu0 0.0
          %897 = vmatprep.subr.mxu0 0.0
          %898 = vmatpush1.msra.mxu0 0.0
          %899 = vmatprep.subr.mxu0 0.0
          %900 = vmatpush1.msra.mxu0 0.0
          %901 = vmatprep.subr.mxu0 0.0
          %902 = vmatpush1.msra.mxu0 0.0
          %903 = vmatprep.subr.mxu0 0.0
          %904 = vmatpush1.msra.mxu0 0.0
          %905 = vmatprep.subr.mxu0 0.0
          %906 = vmatpush1.msra.mxu0 0.0
          %907 = vmatprep.subr.mxu0 0.0
          %908 = vmatpush1.msra.mxu0 0.0
          %909 = vmatprep.subr.mxu0 0.0
          %910 = vmatpush1.msra.mxu0 0.0
          %911 = vmatprep.subr.mxu0 0.0
          %912 = vmatpush1.msra.mxu0 0.0
          %913 = vmatprep.mubr.f32.mxu0 0.0
          %v914 = vand.u32 %v342, 4294901760
          %915 = vmatmul.mubr.f32.gmra.mrb[0].mxu0 %v914
          %v916 = vpop.f32.mrb[0].mxu0
          %v917 = vadd.f32 %v798, %v916
          %v918 = vpop.f32.mrb[0].mxu0
          %919 = vdwg.mxu0
          %920 = vmatprep.subr.mxu0 0.0
          %v921 = vand.u32 %v343, 4294901760
          %922 = vmatpush1.msra.mxu0 %v921
          %923 = vmatprep.subr.mxu0 0.0
          %v924 = vand.u32 %v344, 4294901760
          %925 = vmatpush1.msra.mxu0 %v924
          %926 = vmatprep.subr.mxu0 0.0
          %v927 = vand.u32 %v345, 4294901760
          %928 = vmatpush1.msra.mxu0 %v927
          %929 = vmatprep.subr.mxu0 0.0
          %v930 = vand.u32 %v346, 4294901760
          %931 = vmatpush1.msra.mxu0 %v930
          %932 = vmatprep.subr.mxu0 0.0
          %v933 = vand.u32 %v347, 4294901760
          %934 = vmatpush1.msra.mxu0 %v933
          %935 = vmatprep.subr.mxu0 0.0
          %v936 = vand.u32 %v348, 4294901760
          %937 = vmatpush1.msra.mxu0 %v936
          %938 = vmatprep.subr.mxu0 0.0
          %v939 = vand.u32 %v349, 4294901760
          %940 = vmatpush1.msra.mxu0 %v939
          %941 = vmatprep.subr.mxu0 0.0
          %v942 = vand.u32 %v350, 4294901760
          %943 = vmatpush1.msra.mxu0 %v942
          %944 = vmatprep.subr.mxu0 0.0
          %v945 = vand.u32 %v351, 4294901760
          %946 = vmatpush1.msra.mxu0 %v945
          %947 = vmatprep.subr.mxu0 0.0
          %v948 = vand.u32 %v352, 4294901760
          %949 = vmatpush1.msra.mxu0 %v948
          %950 = vmatprep.subr.mxu0 0.0
          %v951 = vand.u32 %v353, 4294901760
          %952 = vmatpush1.msra.mxu0 %v951
          %953 = vmatprep.subr.mxu0 0.0
          %v954 = vand.u32 %v354, 4294901760
          %955 = vmatpush1.msra.mxu0 %v954
          %956 = vmatprep.subr.mxu0 0.0
          %v957 = vand.u32 %v355, 4294901760
          %958 = vmatpush1.msra.mxu0 %v957
          %959 = vmatprep.subr.mxu0 0.0
          %v960 = vand.u32 %v356, 4294901760
          %961 = vmatpush1.msra.mxu0 %v960
          %962 = vmatprep.subr.mxu0 0.0
          %v963 = vand.u32 %v357, 4294901760
          %964 = vmatpush1.msra.mxu0 %v963
          %965 = vmatprep.subr.mxu0 0.0
          %v966 = vand.u32 %v358, 4294901760
          %967 = vmatpush1.msra.mxu0 %v966
          %968 = vmatprep.subr.mxu0 0.0
          %969 = vmatpush1.msra.mxu0 0.0
          %970 = vmatprep.subr.mxu0 0.0
          %971 = vmatpush1.msra.mxu0 0.0
          %972 = vmatprep.subr.mxu0 0.0
          %973 = vmatpush1.msra.mxu0 0.0
          %974 = vmatprep.subr.mxu0 0.0
          %975 = vmatpush1.msra.mxu0 0.0
          %976 = vmatprep.subr.mxu0 0.0
          %977 = vmatpush1.msra.mxu0 0.0
          %978 = vmatprep.subr.mxu0 0.0
          %979 = vmatpush1.msra.mxu0 0.0
          %980 = vmatprep.subr.mxu0 0.0
          %981 = vmatpush1.msra.mxu0 0.0
          %982 = vmatprep.subr.mxu0 0.0
          %983 = vmatpush1.msra.mxu0 0.0
          %984 = vmatprep.subr.mxu0 0.0
          %985 = vmatpush1.msra.mxu0 0.0
          %986 = vmatprep.subr.mxu0 0.0
          %987 = vmatpush1.msra.mxu0 0.0
          %988 = vmatprep.subr.mxu0 0.0
          %989 = vmatpush1.msra.mxu0 0.0
          %990 = vmatprep.subr.mxu0 0.0
          %991 = vmatpush1.msra.mxu0 0.0
          %992 = vmatprep.subr.mxu0 0.0
          %993 = vmatpush1.msra.mxu0 0.0
          %994 = vmatprep.subr.mxu0 0.0
          %995 = vmatpush1.msra.mxu0 0.0
          %996 = vmatprep.subr.mxu0 0.0
          %997 = vmatpush1.msra.mxu0 0.0
          %998 = vmatprep.subr.mxu0 0.0
          %999 = vmatpush1.msra.mxu0 0.0
          %1000 = vmatprep.mubr.f32.mxu0 0.0
          %v1001 = vand.u32 %v342, 4294901760
          %1002 = vmatmul.mubr.f32.gmra.mrb[0].mxu0 %v1001
          %v1003 = vpop.f32.mrb[0].mxu0
          %v1004 = vadd.f32 %v917, %v1003
          %v1005 = vpop.f32.mrb[0].mxu0
          %1006 = vdwg.mxu0
          %1007 = vst [vmem:[#allocation2] sm:$0xff] %v1004
        $region68: #{tpu_custom_call.1} parent=47 // pred_fallthru
          _
        %v1008 = vld [vmem:[#allocation2] sm:$0xff]
        %v1009 = vld [vmem:[%s302] sm:$0xff]
        %v1010 = vld [vmem:[%s302 + $0x8] sm:$0xff]
        %v1011 = vld [vmem:[%s302 + $0x10] sm:$0xff]
        %v1012 = vld [vmem:[%s302 + $0x18] sm:$0xff]
        %v1013 = vld [vmem:[%s302 + $0x20] sm:$0xff]
        %v1014 = vld [vmem:[%s302 + $0x28] sm:$0xff]
        %v1015 = vld [vmem:[%s302 + $0x30] sm:$0xff]
        %v1016 = vld [vmem:[%s302 + $0x38] sm:$0xff]
        %v1017 = vld [vmem:[%s302 + $0x40] sm:$0xff]
        %v1018 = vld [vmem:[%s302 + $0x48] sm:$0xff]
        %v1019 = vld [vmem:[%s302 + $0x50] sm:$0xff]
        %v1020 = vld [vmem:[%s302 + $0x58] sm:$0xff]
        %v1021 = vld [vmem:[%s302 + $0x60] sm:$0xff]
        %v1022 = vld [vmem:[%s302 + $0x68] sm:$0xff]
        %v1023 = vld [vmem:[%s302 + $0x70] sm:$0xff]
        %v1024 = vld [vmem:[%s302 + $0x78] sm:$0xff]
        %v1025 = vld [vmem:[%s337] sm:$0x1]
        %v1027 = vlaneseq
        %v1028 = vshrl.u32 %v1027, 7
        %v1029 = vsub.s32 0, %v1028
        %v1030 = vrot.slane %v1025, %v1029
        %1032 = vmatprep.subr.mxu0 0.0
        %v1033 = vand.u32 %v1009, 4294901760
        %1034 = vmatpush1.msra.mxu0 %v1033
        %1035 = vmatprep.subr.mxu0 0.0
        %v1036 = vand.u32 %v1010, 4294901760
        %1037 = vmatpush1.msra.mxu0 %v1036
        %1038 = vmatprep.subr.mxu0 0.0
        %v1039 = vand.u32 %v1011, 4294901760
        %1040 = vmatpush1.msra.mxu0 %v1039
        %1041 = vmatprep.subr.mxu0 0.0
        %v1042 = vand.u32 %v1012, 4294901760
        %1043 = vmatpush1.msra.mxu0 %v1042
        %1044 = vmatprep.subr.mxu0 0.0
        %v1045 = vand.u32 %v1013, 4294901760
        %1046 = vmatpush1.msra.mxu0 %v1045
        %1047 = vmatprep.subr.mxu0 0.0
        %v1048 = vand.u32 %v1014, 4294901760
        %1049 = vmatpush1.msra.mxu0 %v1048
        %1050 = vmatprep.subr.mxu0 0.0
        %v1051 = vand.u32 %v1015, 4294901760
        %1052 = vmatpush1.msra.mxu0 %v1051
        %1053 = vmatprep.subr.mxu0 0.0
        %v1054 = vand.u32 %v1016, 4294901760
        %1055 = vmatpush1.msra.mxu0 %v1054
        %1056 = vmatprep.subr.mxu0 0.0
        %v1057 = vand.u32 %v1017, 4294901760
        %1058 = vmatpush1.msra.mxu0 %v1057
        %1059 = vmatprep.subr.mxu0 0.0
        %v1060 = vand.u32 %v1018, 4294901760
        %1061 = vmatpush1.msra.mxu0 %v1060
        %1062 = vmatprep.subr.mxu0 0.0
        %v1063 = vand.u32 %v1019, 4294901760
        %1064 = vmatpush1.msra.mxu0 %v1063
        %1065 = vmatprep.subr.mxu0 0.0
        %v1066 = vand.u32 %v1020, 4294901760
        %1067 = vmatpush1.msra.mxu0 %v1066
        %1068 = vmatprep.subr.mxu0 0.0
        %v1069 = vand.u32 %v1021, 4294901760
        %1070 = vmatpush1.msra.mxu0 %v1069
        %1071 = vmatprep.subr.mxu0 0.0
        %v1072 = vand.u32 %v1022, 4294901760
        %1073 = vmatpush1.msra.mxu0 %v1072
        %1074 = vmatprep.subr.mxu0 0.0
        %v1075 = vand.u32 %v1023, 4294901760
        %1076 = vmatpush1.msra.mxu0 %v1075
        %1077 = vmatprep.subr.mxu0 0.0
        %v1078 = vand.u32 %v1024, 4294901760
        %1079 = vmatpush1.msra.mxu0 %v1078
        %1080 = vmatprep.subr.mxu0 0.0
        %1081 = vmatpush1.msra.mxu0 0.0
        %1082 = vmatprep.subr.mxu0 0.0
        %1083 = vmatpush1.msra.mxu0 0.0
        %1084 = vmatprep.subr.mxu0 0.0
        %1085 = vmatpush1.msra.mxu0 0.0
        %1086 = vmatprep.subr.mxu0 0.0
        %1087 = vmatpush1.msra.mxu0 0.0
        %1088 = vmatprep.subr.mxu0 0.0
        %1089 = vmatpush1.msra.mxu0 0.0
        %1090 = vmatprep.subr.mxu0 0.0
        %1091 = vmatpush1.msra.mxu0 0.0
        %1092 = vmatprep.subr.mxu0 0.0
        %1093 = vmatpush1.msra.mxu0 0.0
        %1094 = vmatprep.subr.mxu0 0.0
        %1095 = vmatpush1.msra.mxu0 0.0
        %1096 = vmatprep.subr.mxu0 0.0
        %1097 = vmatpush1.msra.mxu0 0.0
        %1098 = vmatprep.subr.mxu0 0.0
        %1099 = vmatpush1.msra.mxu0 0.0
        %1100 = vmatprep.subr.mxu0 0.0
        %1101 = vmatpush1.msra.mxu0 0.0
        %1102 = vmatprep.subr.mxu0 0.0
        %1103 = vmatpush1.msra.mxu0 0.0
        %1104 = vmatprep.subr.mxu0 0.0
        %1105 = vmatpush1.msra.mxu0 0.0
        %1106 = vmatprep.subr.mxu0 0.0
        %1107 = vmatpush1.msra.mxu0 0.0
        %1108 = vmatprep.subr.mxu0 0.0
        %1109 = vmatpush1.msra.mxu0 0.0
        %1110 = vmatprep.subr.mxu0 0.0
        %1111 = vmatpush1.msra.mxu0 0.0
        %1112 = vmatprep.mubr.f32.mxu0 0.0
        %v1113 = vand.u32 %v1008, 4294901760
        %v1114 = vsub.f32 %v1008, %v1113
        %v1115 = vand.u32 %v1114, 4294901760
        %v1116 = vsub.f32 %v1114, %v1115
        %v1117 = vand.u32 %v1116, 4294901760
        %1118 = vmatmul.mubr.f32.gmra.mrb[0].mxu0 %v1117
        %v1119 = vpop.f32.mrb[0].mxu0
        %v1120 = vadd.f32 %v1030, %v1119
        %v1121 = vpop.f32.mrb[0].mxu0
        %1122 = vdwg.mxu0
        %1123 = vmatprep.subr.mxu0 0.0
        %v1124 = vand.u32 %v1009, 4294901760
        %v1125 = vsub.f32 %v1009, %v1124
        %v1126 = vand.u32 %v1125, 4294901760
        %v1127 = vsub.f32 %v1125, %v1126
        %v1128 = vand.u32 %v1127, 4294901760
        %1129 = vmatpush1.msra.mxu0 %v1128
        %1130 = vmatprep.subr.mxu0 0.0
        %v1131 = vand.u32 %v1010, 4294901760
        %v1132 = vsub.f32 %v1010, %v1131
        %v1133 = vand.u32 %v1132, 4294901760
        %v1134 = vsub.f32 %v1132, %v1133
        %v1135 = vand.u32 %v1134, 4294901760
        %1136 = vmatpush1.msra.mxu0 %v1135
        %1137 = vmatprep.subr.mxu0 0.0
        %v1138 = vand.u32 %v1011, 4294901760
        %v1139 = vsub.f32 %v1011, %v1138
        %v1140 = vand.u32 %v1139, 4294901760
        %v1141 = vsub.f32 %v1139, %v1140
        %v1142 = vand.u32 %v1141, 4294901760
        %1143 = vmatpush1.msra.mxu0 %v1142
        %1144 = vmatprep.subr.mxu0 0.0
        %v1145 = vand.u32 %v1012, 4294901760
        %v1146 = vsub.f32 %v1012, %v1145
        %v1147 = vand.u32 %v1146, 4294901760
        %v1148 = vsub.f32 %v1146, %v1147
        %v1149 = vand.u32 %v1148, 4294901760
        %1150 = vmatpush1.msra.mxu0 %v1149
        %1151 = vmatprep.subr.mxu0 0.0
        %v1152 = vand.u32 %v1013, 4294901760
        %v1153 = vsub.f32 %v1013, %v1152
        %v1154 = vand.u32 %v1153, 4294901760
        %v1155 = vsub.f32 %v1153, %v1154
        %v1156 = vand.u32 %v1155, 4294901760
        %1157 = vmatpush1.msra.mxu0 %v1156
        %1158 = vmatprep.subr.mxu0 0.0
        %v1159 = vand.u32 %v1014, 4294901760
        %v1160 = vsub.f32 %v1014, %v1159
        %v1161 = vand.u32 %v1160, 4294901760
        %v1162 = vsub.f32 %v1160, %v1161
        %v1163 = vand.u32 %v1162, 4294901760
        %1164 = vmatpush1.msra.mxu0 %v1163
        %1165 = vmatprep.subr.mxu0 0.0
        %v1166 = vand.u32 %v1015, 4294901760
        %v1167 = vsub.f32 %v1015, %v1166
        %v1168 = vand.u32 %v1167, 4294901760
        %v1169 = vsub.f32 %v1167, %v1168
        %v1170 = vand.u32 %v1169, 4294901760
        %1171 = vmatpush1.msra.mxu0 %v1170
        %1172 = vmatprep.subr.mxu0 0.0
        %v1173 = vand.u32 %v1016, 4294901760
        %v1174 = vsub.f32 %v1016, %v1173
        %v1175 = vand.u32 %v1174, 4294901760
        %v1176 = vsub.f32 %v1174, %v1175
        %v1177 = vand.u32 %v1176, 4294901760
        %1178 = vmatpush1.msra.mxu0 %v1177
        %1179 = vmatprep.subr.mxu0 0.0
        %v1180 = vand.u32 %v1017, 4294901760
        %v1181 = vsub.f32 %v1017, %v1180
        %v1182 = vand.u32 %v1181, 4294901760
        %v1183 = vsub.f32 %v1181, %v1182
        %v1184 = vand.u32 %v1183, 4294901760
        %1185 = vmatpush1.msra.mxu0 %v1184
        %1186 = vmatprep.subr.mxu0 0.0
        %v1187 = vand.u32 %v1018, 4294901760
        %v1188 = vsub.f32 %v1018, %v1187
        %v1189 = vand.u32 %v1188, 4294901760
        %v1190 = vsub.f32 %v1188, %v1189
        %v1191 = vand.u32 %v1190, 4294901760
        %1192 = vmatpush1.msra.mxu0 %v1191
        %1193 = vmatprep.subr.mxu0 0.0
        %v1194 = vand.u32 %v1019, 4294901760
        %v1195 = vsub.f32 %v1019, %v1194
        %v1196 = vand.u32 %v1195, 4294901760
        %v1197 = vsub.f32 %v1195, %v1196
        %v1198 = vand.u32 %v1197, 4294901760
        %1199 = vmatpush1.msra.mxu0 %v1198
        %1200 = vmatprep.subr.mxu0 0.0
        %v1201 = vand.u32 %v1020, 4294901760
        %v1202 = vsub.f32 %v1020, %v1201
        %v1203 = vand.u32 %v1202, 4294901760
        %v1204 = vsub.f32 %v1202, %v1203
        %v1205 = vand.u32 %v1204, 4294901760
        %1206 = vmatpush1.msra.mxu0 %v1205
        %1207 = vmatprep.subr.mxu0 0.0
        %v1208 = vand.u32 %v1021, 4294901760
        %v1209 = vsub.f32 %v1021, %v1208
        %v1210 = vand.u32 %v1209, 4294901760
        %v1211 = vsub.f32 %v1209, %v1210
        %v1212 = vand.u32 %v1211, 4294901760
        %1213 = vmatpush1.msra.mxu0 %v1212
        %1214 = vmatprep.subr.mxu0 0.0
        %v1215 = vand.u32 %v1022, 4294901760
        %v1216 = vsub.f32 %v1022, %v1215
        %v1217 = vand.u32 %v1216, 4294901760
        %v1218 = vsub.f32 %v1216, %v1217
        %v1219 = vand.u32 %v1218, 4294901760
        %1220 = vmatpush1.msra.mxu0 %v1219
        %1221 = vmatprep.subr.mxu0 0.0
        %v1222 = vand.u32 %v1023, 4294901760
        %v1223 = vsub.f32 %v1023, %v1222
        %v1224 = vand.u32 %v1223, 4294901760
        %v1225 = vsub.f32 %v1223, %v1224
        %v1226 = vand.u32 %v1225, 4294901760
        %1227 = vmatpush1.msra.mxu0 %v1226
        %1228 = vmatprep.subr.mxu0 0.0
        %v1229 = vand.u32 %v1024, 4294901760
        %v1230 = vsub.f32 %v1024, %v1229
        %v1231 = vand.u32 %v1230, 4294901760
        %v1232 = vsub.f32 %v1230, %v1231
        %v1233 = vand.u32 %v1232, 4294901760
        %1234 = vmatpush1.msra.mxu0 %v1233
        %1235 = vmatprep.subr.mxu0 0.0
        %1236 = vmatpush1.msra.mxu0 0.0
        %1237 = vmatprep.subr.mxu0 0.0
        %1238 = vmatpush1.msra.mxu0 0.0
        %1239 = vmatprep.subr.mxu0 0.0
        %1240 = vmatpush1.msra.mxu0 0.0
        %1241 = vmatprep.subr.mxu0 0.0
        %1242 = vmatpush1.msra.mxu0 0.0
        %1243 = vmatprep.subr.mxu0 0.0
        %1244 = vmatpush1.msra.mxu0 0.0
        %1245 = vmatprep.subr.mxu0 0.0
        %1246 = vmatpush1.msra.mxu0 0.0
        %1247 = vmatprep.subr.mxu0 0.0
        %1248 = vmatpush1.msra.mxu0 0.0
        %1249 = vmatprep.subr.mxu0 0.0
        %1250 = vmatpush1.msra.mxu0 0.0
        %1251 = vmatprep.subr.mxu0 0.0
        %1252 = vmatpush1.msra.mxu0 0.0
        %1253 = vmatprep.subr.mxu0 0.0
        %1254 = vmatpush1.msra.mxu0 0.0
        %1255 = vmatprep.subr.mxu0 0.0
        %1256 = vmatpush1.msra.mxu0 0.0
        %1257 = vmatprep.subr.mxu0 0.0
        %1258 = vmatpush1.msra.mxu0 0.0
        %1259 = vmatprep.subr.mxu0 0.0
        %1260 = vmatpush1.msra.mxu0 0.0
        %1261 = vmatprep.subr.mxu0 0.0
        %1262 = vmatpush1.msra.mxu0 0.0
        %1263 = vmatprep.subr.mxu0 0.0
        %1264 = vmatpush1.msra.mxu0 0.0
        %1265 = vmatprep.subr.mxu0 0.0
        %1266 = vmatpush1.msra.mxu0 0.0
        %1267 = vmatprep.mubr.f32.mxu0 0.0
        %v1268 = vand.u32 %v1008, 4294901760
        %1269 = vmatmul.mubr.f32.gmra.mrb[0].mxu0 %v1268
        %v1270 = vpop.f32.mrb[0].mxu0
        %v1271 = vadd.f32 %v1120, %v1270
        %v1272 = vpop.f32.mrb[0].mxu0
        %1273 = vdwg.mxu0
        %1274 = vmatprep.subr.mxu0 0.0
        %v1275 = vand.u32 %v1009, 4294901760
        %v1276 = vsub.f32 %v1009, %v1275
        %1277 = vmatpush1.msra.mxu0 %v1276
        %1278 = vmatprep.subr.mxu0 0.0
        %v1279 = vand.u32 %v1010, 4294901760
        %v1280 = vsub.f32 %v1010, %v1279
        %1281 = vmatpush1.msra.mxu0 %v1280
        %1282 = vmatprep.subr.mxu0 0.0
        %v1283 = vand.u32 %v1011, 4294901760
        %v1284 = vsub.f32 %v1011, %v1283
        %1285 = vmatpush1.msra.mxu0 %v1284
        %1286 = vmatprep.subr.mxu0 0.0
        %v1287 = vand.u32 %v1012, 4294901760
        %v1288 = vsub.f32 %v1012, %v1287
        %1289 = vmatpush1.msra.mxu0 %v1288
        %1290 = vmatprep.subr.mxu0 0.0
        %v1291 = vand.u32 %v1013, 4294901760
        %v1292 = vsub.f32 %v1013, %v1291
        %1293 = vmatpush1.msra.mxu0 %v1292
        %1294 = vmatprep.subr.mxu0 0.0
        %v1295 = vand.u32 %v1014, 4294901760
        %v1296 = vsub.f32 %v1014, %v1295
        %1297 = vmatpush1.msra.mxu0 %v1296
        %1298 = vmatprep.subr.mxu0 0.0
        %v1299 = vand.u32 %v1015, 4294901760
        %v1300 = vsub.f32 %v1015, %v1299
        %1301 = vmatpush1.msra.mxu0 %v1300
        %1302 = vmatprep.subr.mxu0 0.0
        %v1303 = vand.u32 %v1016, 4294901760
        %v1304 = vsub.f32 %v1016, %v1303
        %1305 = vmatpush1.msra.mxu0 %v1304
        %1306 = vmatprep.subr.mxu0 0.0
        %v1307 = vand.u32 %v1017, 4294901760
        %v1308 = vsub.f32 %v1017, %v1307
        %1309 = vmatpush1.msra.mxu0 %v1308
        %1310 = vmatprep.subr.mxu0 0.0
        %v1311 = vand.u32 %v1018, 4294901760
        %v1312 = vsub.f32 %v1018, %v1311
        %1313 = vmatpush1.msra.mxu0 %v1312
        %1314 = vmatprep.subr.mxu0 0.0
        %v1315 = vand.u32 %v1019, 4294901760
        %v1316 = vsub.f32 %v1019, %v1315
        %1317 = vmatpush1.msra.mxu0 %v1316
        %1318 = vmatprep.subr.mxu0 0.0
        %v1319 = vand.u32 %v1020, 4294901760
        %v1320 = vsub.f32 %v1020, %v1319
        %1321 = vmatpush1.msra.mxu0 %v1320
        %1322 = vmatprep.subr.mxu0 0.0
        %v1323 = vand.u32 %v1021, 4294901760
        %v1324 = vsub.f32 %v1021, %v1323
        %1325 = vmatpush1.msra.mxu0 %v1324
        %1326 = vmatprep.subr.mxu0 0.0
        %v1327 = vand.u32 %v1022, 4294901760
        %v1328 = vsub.f32 %v1022, %v1327
        %1329 = vmatpush1.msra.mxu0 %v1328
        %1330 = vmatprep.subr.mxu0 0.0
        %v1331 = vand.u32 %v1023, 4294901760
        %v1332 = vsub.f32 %v1023, %v1331
        %1333 = vmatpush1.msra.mxu0 %v1332
        %1334 = vmatprep.subr.mxu0 0.0
        %v1335 = vand.u32 %v1024, 4294901760
        %v1336 = vsub.f32 %v1024, %v1335
        %1337 = vmatpush1.msra.mxu0 %v1336
        %1338 = vmatprep.subr.mxu0 0.0
        %1339 = vmatpush1.msra.mxu0 0.0
        %1340 = vmatprep.subr.mxu0 0.0
        %1341 = vmatpush1.msra.mxu0 0.0
        %1342 = vmatprep.subr.mxu0 0.0
        %1343 = vmatpush1.msra.mxu0 0.0
        %1344 = vmatprep.subr.mxu0 0.0
        %1345 = vmatpush1.msra.mxu0 0.0
        %1346 = vmatprep.subr.mxu0 0.0
        %1347 = vmatpush1.msra.mxu0 0.0
        %1348 = vmatprep.subr.mxu0 0.0
        %1349 = vmatpush1.msra.mxu0 0.0
        %1350 = vmatprep.subr.mxu0 0.0
        %1351 = vmatpush1.msra.mxu0 0.0
        %1352 = vmatprep.subr.mxu0 0.0
        %1353 = vmatpush1.msra.mxu0 0.0
        %1354 = vmatprep.subr.mxu0 0.0
        %1355 = vmatpush1.msra.mxu0 0.0
        %1356 = vmatprep.subr.mxu0 0.0
        %1357 = vmatpush1.msra.mxu0 0.0
        %1358 = vmatprep.subr.mxu0 0.0
        %1359 = vmatpush1.msra.mxu0 0.0
        %1360 = vmatprep.subr.mxu0 0.0
        %1361 = vmatpush1.msra.mxu0 0.0
        %1362 = vmatprep.subr.mxu0 0.0
        %1363 = vmatpush1.msra.mxu0 0.0
        %1364 = vmatprep.subr.mxu0 0.0
        %1365 = vmatpush1.msra.mxu0 0.0
        %1366 = vmatprep.subr.mxu0 0.0
        %1367 = vmatpush1.msra.mxu0 0.0
        %1368 = vmatprep.subr.mxu0 0.0
        %1369 = vmatpush1.msra.mxu0 0.0
        %1370 = vmatprep.mubr.f32.mxu0 0.0
        %v1371 = vand.u32 %v1008, 4294901760
        %v1372 = vsub.f32 %v1008, %v1371
        %1373 = vmatmul.mubr.f32.gmra.mrb[0].mxu0 %v1372
        %v1374 = vpop.f32.mrb[0].mxu0
        %v1375 = vadd.f32 %v1271, %v1374
        %v1376 = vpop.f32.mrb[0].mxu0
        %1377 = vdwg.mxu0
        %1378 = vmatprep.subr.mxu0 0.0
        %v1379 = vand.u32 %v1009, 4294901760
        %1380 = vmatpush1.msra.mxu0 %v1379
        %1381 = vmatprep.subr.mxu0 0.0
        %v1382 = vand.u32 %v1010, 4294901760
        %1383 = vmatpush1.msra.mxu0 %v1382
        %1384 = vmatprep.subr.mxu0 0.0
        %v1385 = vand.u32 %v1011, 4294901760
        %1386 = vmatpush1.msra.mxu0 %v1385
        %1387 = vmatprep.subr.mxu0 0.0
        %v1388 = vand.u32 %v1012, 4294901760
        %1389 = vmatpush1.msra.mxu0 %v1388
        %1390 = vmatprep.subr.mxu0 0.0
        %v1391 = vand.u32 %v1013, 4294901760
        %1392 = vmatpush1.msra.mxu0 %v1391
        %1393 = vmatprep.subr.mxu0 0.0
        %v1394 = vand.u32 %v1014, 4294901760
        %1395 = vmatpush1.msra.mxu0 %v1394
        %1396 = vmatprep.subr.mxu0 0.0
        %v1397 = vand.u32 %v1015, 4294901760
        %1398 = vmatpush1.msra.mxu0 %v1397
        %1399 = vmatprep.subr.mxu0 0.0
        %v1400 = vand.u32 %v1016, 4294901760
        %1401 = vmatpush1.msra.mxu0 %v1400
        %1402 = vmatprep.subr.mxu0 0.0
        %v1403 = vand.u32 %v1017, 4294901760
        %1404 = vmatpush1.msra.mxu0 %v1403
        %1405 = vmatprep.subr.mxu0 0.0
        %v1406 = vand.u32 %v1018, 4294901760
        %1407 = vmatpush1.msra.mxu0 %v1406
        %1408 = vmatprep.subr.mxu0 0.0
        %v1409 = vand.u32 %v1019, 4294901760
        %1410 = vmatpush1.msra.mxu0 %v1409
        %1411 = vmatprep.subr.mxu0 0.0
        %v1412 = vand.u32 %v1020, 4294901760
        %1413 = vmatpush1.msra.mxu0 %v1412
        %1414 = vmatprep.subr.mxu0 0.0
        %v1415 = vand.u32 %v1021, 4294901760
        %1416 = vmatpush1.msra.mxu0 %v1415
        %1417 = vmatprep.subr.mxu0 0.0
        %v1418 = vand.u32 %v1022, 4294901760
        %1419 = vmatpush1.msra.mxu0 %v1418
        %1420 = vmatprep.subr.mxu0 0.0
        %v1421 = vand.u32 %v1023, 4294901760
        %1422 = vmatpush1.msra.mxu0 %v1421
        %1423 = vmatprep.subr.mxu0 0.0
        %v1424 = vand.u32 %v1024, 4294901760
        %1425 = vmatpush1.msra.mxu0 %v1424
        %1426 = vmatprep.subr.mxu0 0.0
        %1427 = vmatpush1.msra.mxu0 0.0
        %1428 = vmatprep.subr.mxu0 0.0
        %1429 = vmatpush1.msra.mxu0 0.0
        %1430 = vmatprep.subr.mxu0 0.0
        %1431 = vmatpush1.msra.mxu0 0.0
        %1432 = vmatprep.subr.mxu0 0.0
        %1433 = vmatpush1.msra.mxu0 0.0
        %1434 = vmatprep.subr.mxu0 0.0
        %1435 = vmatpush1.msra.mxu0 0.0
        %1436 = vmatprep.subr.mxu0 0.0
        %1437 = vmatpush1.msra.mxu0 0.0
        %1438 = vmatprep.subr.mxu0 0.0
        %1439 = vmatpush1.msra.mxu0 0.0
        %1440 = vmatprep.subr.mxu0 0.0
        %1441 = vmatpush1.msra.mxu0 0.0
        %1442 = vmatprep.subr.mxu0 0.0
        %1443 = vmatpush1.msra.mxu0 0.0
        %1444 = vmatprep.subr.mxu0 0.0
        %1445 = vmatpush1.msra.mxu0 0.0
        %1446 = vmatprep.subr.mxu0 0.0
        %1447 = vmatpush1.msra.mxu0 0.0
        %1448 = vmatprep.subr.mxu0 0.0
        %1449 = vmatpush1.msra.mxu0 0.0
        %1450 = vmatprep.subr.mxu0 0.0
        %1451 = vmatpush1.msra.mxu0 0.0
        %1452 = vmatprep.subr.mxu0 0.0
        %1453 = vmatpush1.msra.mxu0 0.0
        %1454 = vmatprep.subr.mxu0 0.0
        %1455 = vmatpush1.msra.mxu0 0.0
        %1456 = vmatprep.subr.mxu0 0.0
        %1457 = vmatpush1.msra.mxu0 0.0
        %1458 = vmatprep.mubr.f32.mxu0 0.0
        %v1459 = vand.u32 %v1008, 4294901760
        %v1460 = vsub.f32 %v1008, %v1459
        %v1461 = vand.u32 %v1460, 4294901760
        %1462 = vmatmul.mubr.f32.gmra.mrb[0].mxu0 %v1461
        %v1463 = vpop.f32.mrb[0].mxu0
        %v1464 = vadd.f32 %v1375, %v1463
        %v1465 = vpop.f32.mrb[0].mxu0
        %1466 = vdwg.mxu0
        %1467 = vmatprep.subr.mxu0 0.0
        %v1468 = vand.u32 %v1009, 4294901760
        %v1469 = vsub.f32 %v1009, %v1468
        %v1470 = vand.u32 %v1469, 4294901760
        %1471 = vmatpush1.msra.mxu0 %v1470
        %1472 = vmatprep.subr.mxu0 0.0
        %v1473 = vand.u32 %v1010, 4294901760
        %v1474 = vsub.f32 %v1010, %v1473
        %v1475 = vand.u32 %v1474, 4294901760
        %1476 = vmatpush1.msra.mxu0 %v1475
        %1477 = vmatprep.subr.mxu0 0.0
        %v1478 = vand.u32 %v1011, 4294901760
        %v1479 = vsub.f32 %v1011, %v1478
        %v1480 = vand.u32 %v1479, 4294901760
        %1481 = vmatpush1.msra.mxu0 %v1480
        %1482 = vmatprep.subr.mxu0 0.0
        %v1483 = vand.u32 %v1012, 4294901760
        %v1484 = vsub.f32 %v1012, %v1483
        %v1485 = vand.u32 %v1484, 4294901760
        %1486 = vmatpush1.msra.mxu0 %v1485
        %1487 = vmatprep.subr.mxu0 0.0
        %v1488 = vand.u32 %v1013, 4294901760
        %v1489 = vsub.f32 %v1013, %v1488
        %v1490 = vand.u32 %v1489, 4294901760
        %1491 = vmatpush1.msra.mxu0 %v1490
        %1492 = vmatprep.subr.mxu0 0.0
        %v1493 = vand.u32 %v1014, 4294901760
        %v1494 = vsub.f32 %v1014, %v1493
        %v1495 = vand.u32 %v1494, 4294901760
        %1496 = vmatpush1.msra.mxu0 %v1495
        %1497 = vmatprep.subr.mxu0 0.0
        %v1498 = vand.u32 %v1015, 4294901760
        %v1499 = vsub.f32 %v1015, %v1498
        %v1500 = vand.u32 %v1499, 4294901760
        %1501 = vmatpush1.msra.mxu0 %v1500
        %1502 = vmatprep.subr.mxu0 0.0
        %v1503 = vand.u32 %v1016, 4294901760
        %v1504 = vsub.f32 %v1016, %v1503
        %v1505 = vand.u32 %v1504, 4294901760
        %1506 = vmatpush1.msra.mxu0 %v1505
        %1507 = vmatprep.subr.mxu0 0.0
        %v1508 = vand.u32 %v1017, 4294901760
        %v1509 = vsub.f32 %v1017, %v1508
        %v1510 = vand.u32 %v1509, 4294901760
        %1511 = vmatpush1.msra.mxu0 %v1510
        %1512 = vmatprep.subr.mxu0 0.0
        %v1513 = vand.u32 %v1018, 4294901760
        %v1514 = vsub.f32 %v1018, %v1513
        %v1515 = vand.u32 %v1514, 4294901760
        %1516 = vmatpush1.msra.mxu0 %v1515
        %1517 = vmatprep.subr.mxu0 0.0
        %v1518 = vand.u32 %v1019, 4294901760
        %v1519 = vsub.f32 %v1019, %v1518
        %v1520 = vand.u32 %v1519, 4294901760
        %1521 = vmatpush1.msra.mxu0 %v1520
        %1522 = vmatprep.subr.mxu0 0.0
        %v1523 = vand.u32 %v1020, 4294901760
        %v1524 = vsub.f32 %v1020, %v1523
        %v1525 = vand.u32 %v1524, 4294901760
        %1526 = vmatpush1.msra.mxu0 %v1525
        %1527 = vmatprep.subr.mxu0 0.0
        %v1528 = vand.u32 %v1021, 4294901760
        %v1529 = vsub.f32 %v1021, %v1528
        %v1530 = vand.u32 %v1529, 4294901760
        %1531 = vmatpush1.msra.mxu0 %v1530
        %1532 = vmatprep.subr.mxu0 0.0
        %v1533 = vand.u32 %v1022, 4294901760
        %v1534 = vsub.f32 %v1022, %v1533
        %v1535 = vand.u32 %v1534, 4294901760
        %1536 = vmatpush1.msra.mxu0 %v1535
        %1537 = vmatprep.subr.mxu0 0.0
        %v1538 = vand.u32 %v1023, 4294901760
        %v1539 = vsub.f32 %v1023, %v1538
        %v1540 = vand.u32 %v1539, 4294901760
        %1541 = vmatpush1.msra.mxu0 %v1540
        %1542 = vmatprep.subr.mxu0 0.0
        %v1543 = vand.u32 %v1024, 4294901760
        %v1544 = vsub.f32 %v1024, %v1543
        %v1545 = vand.u32 %v1544, 4294901760
        %1546 = vmatpush1.msra.mxu0 %v1545
        %1547 = vmatprep.subr.mxu0 0.0
        %1548 = vmatpush1.msra.mxu0 0.0
        %1549 = vmatprep.subr.mxu0 0.0
        %1550 = vmatpush1.msra.mxu0 0.0
        %1551 = vmatprep.subr.mxu0 0.0
        %1552 = vmatpush1.msra.mxu0 0.0
        %1553 = vmatprep.subr.mxu0 0.0
        %1554 = vmatpush1.msra.mxu0 0.0
        %1555 = vmatprep.subr.mxu0 0.0
        %1556 = vmatpush1.msra.mxu0 0.0
        %1557 = vmatprep.subr.mxu0 0.0
        %1558 = vmatpush1.msra.mxu0 0.0
        %1559 = vmatprep.subr.mxu0 0.0
        %1560 = vmatpush1.msra.mxu0 0.0
        %1561 = vmatprep.subr.mxu0 0.0
        %1562 = vmatpush1.msra.mxu0 0.0
        %1563 = vmatprep.subr.mxu0 0.0
        %1564 = vmatpush1.msra.mxu0 0.0
        %1565 = vmatprep.subr.mxu0 0.0
        %1566 = vmatpush1.msra.mxu0 0.0
        %1567 = vmatprep.subr.mxu0 0.0
        %1568 = vmatpush1.msra.mxu0 0.0
        %1569 = vmatprep.subr.mxu0 0.0
        %1570 = vmatpush1.msra.mxu0 0.0
        %1571 = vmatprep.subr.mxu0 0.0
        %1572 = vmatpush1.msra.mxu0 0.0
        %1573 = vmatprep.subr.mxu0 0.0
        %1574 = vmatpush1.msra.mxu0 0.0
        %1575 = vmatprep.subr.mxu0 0.0
        %1576 = vmatpush1.msra.mxu0 0.0
        %1577 = vmatprep.subr.mxu0 0.0
        %1578 = vmatpush1.msra.mxu0 0.0
        %1579 = vmatprep.mubr.f32.mxu0 0.0
        %v1580 = vand.u32 %v1008, 4294901760
        %1581 = vmatmul.mubr.f32.gmra.mrb[0].mxu0 %v1580
        %v1582 = vpop.f32.mrb[0].mxu0
        %v1583 = vadd.f32 %v1464, %v1582
        %v1584 = vpop.f32.mrb[0].mxu0
        %1585 = vdwg.mxu0
        %1586 = vmatprep.subr.mxu0 0.0
        %v1587 = vand.u32 %v1009, 4294901760
        %1588 = vmatpush1.msra.mxu0 %v1587
        %1589 = vmatprep.subr.mxu0 0.0
        %v1590 = vand.u32 %v1010, 4294901760
        %1591 = vmatpush1.msra.mxu0 %v1590
        %1592 = vmatprep.subr.mxu0 0.0
        %v1593 = vand.u32 %v1011, 4294901760
        %1594 = vmatpush1.msra.mxu0 %v1593
        %1595 = vmatprep.subr.mxu0 0.0
        %v1596 = vand.u32 %v1012, 4294901760
        %1597 = vmatpush1.msra.mxu0 %v1596
        %1598 = vmatprep.subr.mxu0 0.0
        %v1599 = vand.u32 %v1013, 4294901760
        %1600 = vmatpush1.msra.mxu0 %v1599
        %1601 = vmatprep.subr.mxu0 0.0
        %v1602 = vand.u32 %v1014, 4294901760
        %1603 = vmatpush1.msra.mxu0 %v1602
        %1604 = vmatprep.subr.mxu0 0.0
        %v1605 = vand.u32 %v1015, 4294901760
        %1606 = vmatpush1.msra.mxu0 %v1605
        %1607 = vmatprep.subr.mxu0 0.0
        %v1608 = vand.u32 %v1016, 4294901760
        %1609 = vmatpush1.msra.mxu0 %v1608
        %1610 = vmatprep.subr.mxu0 0.0
        %v1611 = vand.u32 %v1017, 4294901760
        %1612 = vmatpush1.msra.mxu0 %v1611
        %1613 = vmatprep.subr.mxu0 0.0
        %v1614 = vand.u32 %v1018, 4294901760
        %1615 = vmatpush1.msra.mxu0 %v1614
        %1616 = vmatprep.subr.mxu0 0.0
        %v1617 = vand.u32 %v1019, 4294901760
        %1618 = vmatpush1.msra.mxu0 %v1617
        %1619 = vmatprep.subr.mxu0 0.0
        %v1620 = vand.u32 %v1020, 4294901760
        %1621 = vmatpush1.msra.mxu0 %v1620
        %1622 = vmatprep.subr.mxu0 0.0
        %v1623 = vand.u32 %v1021, 4294901760
        %1624 = vmatpush1.msra.mxu0 %v1623
        %1625 = vmatprep.subr.mxu0 0.0
        %v1626 = vand.u32 %v1022, 4294901760
        %1627 = vmatpush1.msra.mxu0 %v1626
        %1628 = vmatprep.subr.mxu0 0.0
        %v1629 = vand.u32 %v1023, 4294901760
        %1630 = vmatpush1.msra.mxu0 %v1629
        %1631 = vmatprep.subr.mxu0 0.0
        %v1632 = vand.u32 %v1024, 4294901760
        %1633 = vmatpush1.msra.mxu0 %v1632
        %1634 = vmatprep.subr.mxu0 0.0
        %1635 = vmatpush1.msra.mxu0 0.0
        %1636 = vmatprep.subr.mxu0 0.0
        %1637 = vmatpush1.msra.mxu0 0.0
        %1638 = vmatprep.subr.mxu0 0.0
        %1639 = vmatpush1.msra.mxu0 0.0
        %1640 = vmatprep.subr.mxu0 0.0
        %1641 = vmatpush1.msra.mxu0 0.0
        %1642 = vmatprep.subr.mxu0 0.0
        %1643 = vmatpush1.msra.mxu0 0.0
        %1644 = vmatprep.subr.mxu0 0.0
        %1645 = vmatpush1.msra.mxu0 0.0
        %1646 = vmatprep.subr.mxu0 0.0
        %1647 = vmatpush1.msra.mxu0 0.0
        %1648 = vmatprep.subr.mxu0 0.0
        %1649 = vmatpush1.msra.mxu0 0.0
        %1650 = vmatprep.subr.mxu0 0.0
        %1651 = vmatpush1.msra.mxu0 0.0
        %1652 = vmatprep.subr.mxu0 0.0
        %1653 = vmatpush1.msra.mxu0 0.0
        %1654 = vmatprep.subr.mxu0 0.0
        %1655 = vmatpush1.msra.mxu0 0.0
        %1656 = vmatprep.subr.mxu0 0.0
        %1657 = vmatpush1.msra.mxu0 0.0
        %1658 = vmatprep.subr.mxu0 0.0
        %1659 = vmatpush1.msra.mxu0 0.0
        %1660 = vmatprep.subr.mxu0 0.0
        %1661 = vmatpush1.msra.mxu0 0.0
        %1662 = vmatprep.subr.mxu0 0.0
        %1663 = vmatpush1.msra.mxu0 0.0
        %1664 = vmatprep.subr.mxu0 0.0
        %1665 = vmatpush1.msra.mxu0 0.0
        %1666 = vmatprep.mubr.f32.mxu0 0.0
        %v1667 = vand.u32 %v1008, 4294901760
        %1668 = vmatmul.mubr.f32.gmra.mrb[0].mxu0 %v1667
        %v1669 = vpop.f32.mrb[0].mxu0
        %v1670 = vadd.f32 %v1583, %v1669
        %v1671 = vpop.f32.mrb[0].mxu0
        %1672 = vdwg.mxu0
        %v1673 = vmax.f32 %v1670, 0.0
        %1674 = vst [vmem:[#allocation2] sm:$0xff] %v1673
        %p1675 = scmp.eq.s32.totalorder %s21, 1
        // Predicated region
        $region69: #{tpu_custom_call.1} parent=47 // pred_check
          %p1676 = pneg %p1675
        $region70: #{tpu_custom_call.1} parent=47 // pred_check_branch
          %1678 = sbr.rel (%p1676) target = $region72
        $region71: #{tpu_custom_call.1} parent=47 // pred_region
          %v1679 = vld [vmem:[#allocation2] sm:$0xff]
          %v1680 = vld [vmem:[#allocation9] sm:$0xff]
          %v1681 = vld [vmem:[#allocation9 + $0x8] sm:$0xff]
          %v1682 = vld [vmem:[#allocation9 + $0x10] sm:$0xff]
          %v1683 = vld [vmem:[#allocation9 + $0x18] sm:$0xff]
          %v1684 = vld [vmem:[#allocation9 + $0x20] sm:$0xff]
          %v1685 = vld [vmem:[#allocation9 + $0x28] sm:$0xff]
          %v1686 = vld [vmem:[#allocation9 + $0x30] sm:$0xff]
          %v1687 = vld [vmem:[#allocation9 + $0x38] sm:$0xff]
          %v1688 = vld [vmem:[#allocation9 + $0x40] sm:$0xff]
          %v1689 = vld [vmem:[#allocation9 + $0x48] sm:$0xff]
          %v1690 = vld [vmem:[#allocation9 + $0x50] sm:$0xff]
          %v1691 = vld [vmem:[#allocation9 + $0x58] sm:$0xff]
          %v1692 = vld [vmem:[#allocation9 + $0x60] sm:$0xff]
          %v1693 = vld [vmem:[#allocation9 + $0x68] sm:$0xff]
          %v1694 = vld [vmem:[#allocation9 + $0x70] sm:$0xff]
          %v1695 = vld [vmem:[#allocation9 + $0x78] sm:$0xff]
          %v1696 = vld [vmem:[%s6] sm:$0x1]
          %v1698 = vlaneseq
          %v1699 = vshrl.u32 %v1698, 7
          %v1700 = vsub.s32 0, %v1699
          %v1701 = vrot.slane %v1696, %v1700
          %1703 = vmatprep.subr.mxu0 0.0
          %v1704 = vand.u32 %v1680, 4294901760
          %1705 = vmatpush1.msra.mxu0 %v1704
          %1706 = vmatprep.subr.mxu0 0.0
          %v1707 = vand.u32 %v1681, 4294901760
          %1708 = vmatpush1.msra.mxu0 %v1707
          %1709 = vmatprep.subr.mxu0 0.0
          %v1710 = vand.u32 %v1682, 4294901760
          %1711 = vmatpush1.msra.mxu0 %v1710
          %1712 = vmatprep.subr.mxu0 0.0
          %v1713 = vand.u32 %v1683, 4294901760
          %1714 = vmatpush1.msra.mxu0 %v1713
          %1715 = vmatprep.subr.mxu0 0.0
          %v1716 = vand.u32 %v1684, 4294901760
          %1717 = vmatpush1.msra.mxu0 %v1716
          %1718 = vmatprep.subr.mxu0 0.0
          %v1719 = vand.u32 %v1685, 4294901760
          %1720 = vmatpush1.msra.mxu0 %v1719
          %1721 = vmatprep.subr.mxu0 0.0
          %v1722 = vand.u32 %v1686, 4294901760
          %1723 = vmatpush1.msra.mxu0 %v1722
          %1724 = vmatprep.subr.mxu0 0.0
          %v1725 = vand.u32 %v1687, 4294901760
          %1726 = vmatpush1.msra.mxu0 %v1725
          %1727 = vmatprep.subr.mxu0 0.0
          %v1728 = vand.u32 %v1688, 4294901760
          %1729 = vmatpush1.msra.mxu0 %v1728
          %1730 = vmatprep.subr.mxu0 0.0
          %v1731 = vand.u32 %v1689, 4294901760
          %1732 = vmatpush1.msra.mxu0 %v1731
          %1733 = vmatprep.subr.mxu0 0.0
          %v1734 = vand.u32 %v1690, 4294901760
          %1735 = vmatpush1.msra.mxu0 %v1734
          %1736 = vmatprep.subr.mxu0 0.0
          %v1737 = vand.u32 %v1691, 4294901760
          %1738 = vmatpush1.msra.mxu0 %v1737
          %1739 = vmatprep.subr.mxu0 0.0
          %v1740 = vand.u32 %v1692, 4294901760
          %1741 = vmatpush1.msra.mxu0 %v1740
          %1742 = vmatprep.subr.mxu0 0.0
          %v1743 = vand.u32 %v1693, 4294901760
          %1744 = vmatpush1.msra.mxu0 %v1743
          %1745 = vmatprep.subr.mxu0 0.0
          %v1746 = vand.u32 %v1694, 4294901760
          %1747 = vmatpush1.msra.mxu0 %v1746
          %1748 = vmatprep.subr.mxu0 0.0
          %v1749 = vand.u32 %v1695, 4294901760
          %1750 = vmatpush1.msra.mxu0 %v1749
          %1751 = vmatprep.subr.mxu0 0.0
          %1752 = vmatpush1.msra.mxu0 0.0
          %1753 = vmatprep.subr.mxu0 0.0
          %1754 = vmatpush1.msra.mxu0 0.0
          %1755 = vmatprep.subr.mxu0 0.0
          %1756 = vmatpush1.msra.mxu0 0.0
          %1757 = vmatprep.subr.mxu0 0.0
          %1758 = vmatpush1.msra.mxu0 0.0
          %1759 = vmatprep.subr.mxu0 0.0
          %1760 = vmatpush1.msra.mxu0 0.0
          %1761 = vmatprep.subr.mxu0 0.0
          %1762 = vmatpush1.msra.mxu0 0.0
          %1763 = vmatprep.subr.mxu0 0.0
          %1764 = vmatpush1.msra.mxu0 0.0
          %1765 = vmatprep.subr.mxu0 0.0
          %1766 = vmatpush1.msra.mxu0 0.0
          %1767 = vmatprep.subr.mxu0 0.0
          %1768 = vmatpush1.msra.mxu0 0.0
          %1769 = vmatprep.subr.mxu0 0.0
          %1770 = vmatpush1.msra.mxu0 0.0
          %1771 = vmatprep.subr.mxu0 0.0
          %1772 = vmatpush1.msra.mxu0 0.0
          %1773 = vmatprep.subr.mxu0 0.0
          %1774 = vmatpush1.msra.mxu0 0.0
          %1775 = vmatprep.subr.mxu0 0.0
          %1776 = vmatpush1.msra.mxu0 0.0
          %1777 = vmatprep.subr.mxu0 0.0
          %1778 = vmatpush1.msra.mxu0 0.0
          %1779 = vmatprep.subr.mxu0 0.0
          %1780 = vmatpush1.msra.mxu0 0.0
          %1781 = vmatprep.subr.mxu0 0.0
          %1782 = vmatpush1.msra.mxu0 0.0
          %1783 = vmatprep.mubr.f32.mxu0 0.0
          %v1784 = vand.u32 %v1679, 4294901760
          %v1785 = vsub.f32 %v1679, %v1784
          %v1786 = vand.u32 %v1785, 4294901760
          %v1787 = vsub.f32 %v1785, %v1786
          %v1788 = vand.u32 %v1787, 4294901760
          %1789 = vmatmul.mubr.f32.gmra.mrb[0].mxu0 %v1788
          %v1790 = vpop.f32.mrb[0].mxu0
          %v1791 = vadd.f32 %v1701, %v1790
          %v1792 = vpop.f32.mrb[0].mxu0
          %1793 = vdwg.mxu0
          %1794 = vmatprep.subr.mxu0 0.0
          %v1795 = vand.u32 %v1680, 4294901760
          %v1796 = vsub.f32 %v1680, %v1795
          %v1797 = vand.u32 %v1796, 4294901760
          %v1798 = vsub.f32 %v1796, %v1797
          %v1799 = vand.u32 %v1798, 4294901760
          %1800 = vmatpush1.msra.mxu0 %v1799
          %1801 = vmatprep.subr.mxu0 0.0
          %v1802 = vand.u32 %v1681, 4294901760
          %v1803 = vsub.f32 %v1681, %v1802
          %v1804 = vand.u32 %v1803, 4294901760
          %v1805 = vsub.f32 %v1803, %v1804
          %v1806 = vand.u32 %v1805, 4294901760
          %1807 = vmatpush1.msra.mxu0 %v1806
          %1808 = vmatprep.subr.mxu0 0.0
          %v1809 = vand.u32 %v1682, 4294901760
          %v1810 = vsub.f32 %v1682, %v1809
          %v1811 = vand.u32 %v1810, 4294901760
          %v1812 = vsub.f32 %v1810, %v1811
          %v1813 = vand.u32 %v1812, 4294901760
          %1814 = vmatpush1.msra.mxu0 %v1813
          %1815 = vmatprep.subr.mxu0 0.0
          %v1816 = vand.u32 %v1683, 4294901760
          %v1817 = vsub.f32 %v1683, %v1816
          %v1818 = vand.u32 %v1817, 4294901760
          %v1819 = vsub.f32 %v1817, %v1818
          %v1820 = vand.u32 %v1819, 4294901760
          %1821 = vmatpush1.msra.mxu0 %v1820
          %1822 = vmatprep.subr.mxu0 0.0
          %v1823 = vand.u32 %v1684, 4294901760
          %v1824 = vsub.f32 %v1684, %v1823
          %v1825 = vand.u32 %v1824, 4294901760
          %v1826 = vsub.f32 %v1824, %v1825
          %v1827 = vand.u32 %v1826, 4294901760
          %1828 = vmatpush1.msra.mxu0 %v1827
          %1829 = vmatprep.subr.mxu0 0.0
          %v1830 = vand.u32 %v1685, 4294901760
          %v1831 = vsub.f32 %v1685, %v1830
          %v1832 = vand.u32 %v1831, 4294901760
          %v1833 = vsub.f32 %v1831, %v1832
          %v1834 = vand.u32 %v1833, 4294901760
          %1835 = vmatpush1.msra.mxu0 %v1834
          %1836 = vmatprep.subr.mxu0 0.0
          %v1837 = vand.u32 %v1686, 4294901760
          %v1838 = vsub.f32 %v1686, %v1837
          %v1839 = vand.u32 %v1838, 4294901760
          %v1840 = vsub.f32 %v1838, %v1839
          %v1841 = vand.u32 %v1840, 4294901760
          %1842 = vmatpush1.msra.mxu0 %v1841
          %1843 = vmatprep.subr.mxu0 0.0
          %v1844 = vand.u32 %v1687, 4294901760
          %v1845 = vsub.f32 %v1687, %v1844
          %v1846 = vand.u32 %v1845, 4294901760
          %v1847 = vsub.f32 %v1845, %v1846
          %v1848 = vand.u32 %v1847, 4294901760
          %1849 = vmatpush1.msra.mxu0 %v1848
          %1850 = vmatprep.subr.mxu0 0.0
          %v1851 = vand.u32 %v1688, 4294901760
          %v1852 = vsub.f32 %v1688, %v1851
          %v1853 = vand.u32 %v1852, 4294901760
          %v1854 = vsub.f32 %v1852, %v1853
          %v1855 = vand.u32 %v1854, 4294901760
          %1856 = vmatpush1.msra.mxu0 %v1855
          %1857 = vmatprep.subr.mxu0 0.0
          %v1858 = vand.u32 %v1689, 4294901760
          %v1859 = vsub.f32 %v1689, %v1858
          %v1860 = vand.u32 %v1859, 4294901760
          %v1861 = vsub.f32 %v1859, %v1860
          %v1862 = vand.u32 %v1861, 4294901760
          %1863 = vmatpush1.msra.mxu0 %v1862
          %1864 = vmatprep.subr.mxu0 0.0
          %v1865 = vand.u32 %v1690, 4294901760
          %v1866 = vsub.f32 %v1690, %v1865
          %v1867 = vand.u32 %v1866, 4294901760
          %v1868 = vsub.f32 %v1866, %v1867
          %v1869 = vand.u32 %v1868, 4294901760
          %1870 = vmatpush1.msra.mxu0 %v1869
          %1871 = vmatprep.subr.mxu0 0.0
          %v1872 = vand.u32 %v1691, 4294901760
          %v1873 = vsub.f32 %v1691, %v1872
          %v1874 = vand.u32 %v1873, 4294901760
          %v1875 = vsub.f32 %v1873, %v1874
          %v1876 = vand.u32 %v1875, 4294901760
          %1877 = vmatpush1.msra.mxu0 %v1876
          %1878 = vmatprep.subr.mxu0 0.0
          %v1879 = vand.u32 %v1692, 4294901760
          %v1880 = vsub.f32 %v1692, %v1879
          %v1881 = vand.u32 %v1880, 4294901760
          %v1882 = vsub.f32 %v1880, %v1881
          %v1883 = vand.u32 %v1882, 4294901760
          %1884 = vmatpush1.msra.mxu0 %v1883
          %1885 = vmatprep.subr.mxu0 0.0
          %v1886 = vand.u32 %v1693, 4294901760
          %v1887 = vsub.f32 %v1693, %v1886
          %v1888 = vand.u32 %v1887, 4294901760
          %v1889 = vsub.f32 %v1887, %v1888
          %v1890 = vand.u32 %v1889, 4294901760
          %1891 = vmatpush1.msra.mxu0 %v1890
          %1892 = vmatprep.subr.mxu0 0.0
          %v1893 = vand.u32 %v1694, 4294901760
          %v1894 = vsub.f32 %v1694, %v1893
          %v1895 = vand.u32 %v1894, 4294901760
          %v1896 = vsub.f32 %v1894, %v1895
          %v1897 = vand.u32 %v1896, 4294901760
          %1898 = vmatpush1.msra.mxu0 %v1897
          %1899 = vmatprep.subr.mxu0 0.0
          %v1900 = vand.u32 %v1695, 4294901760
          %v1901 = vsub.f32 %v1695, %v1900
          %v1902 = vand.u32 %v1901, 4294901760
          %v1903 = vsub.f32 %v1901, %v1902
          %v1904 = vand.u32 %v1903, 4294901760
          %1905 = vmatpush1.msra.mxu0 %v1904
          %1906 = vmatprep.subr.mxu0 0.0
          %1907 = vmatpush1.msra.mxu0 0.0
          %1908 = vmatprep.subr.mxu0 0.0
          %1909 = vmatpush1.msra.mxu0 0.0
          %1910 = vmatprep.subr.mxu0 0.0
          %1911 = vmatpush1.msra.mxu0 0.0
          %1912 = vmatprep.subr.mxu0 0.0
          %1913 = vmatpush1.msra.mxu0 0.0
          %1914 = vmatprep.subr.mxu0 0.0
          %1915 = vmatpush1.msra.mxu0 0.0
          %1916 = vmatprep.subr.mxu0 0.0
          %1917 = vmatpush1.msra.mxu0 0.0
          %1918 = vmatprep.subr.mxu0 0.0
          %1919 = vmatpush1.msra.mxu0 0.0
          %1920 = vmatprep.subr.mxu0 0.0
          %1921 = vmatpush1.msra.mxu0 0.0
          %1922 = vmatprep.subr.mxu0 0.0
          %1923 = vmatpush1.msra.mxu0 0.0
          %1924 = vmatprep.subr.mxu0 0.0
          %1925 = vmatpush1.msra.mxu0 0.0
          %1926 = vmatprep.subr.mxu0 0.0
          %1927 = vmatpush1.msra.mxu0 0.0
          %1928 = vmatprep.subr.mxu0 0.0
          %1929 = vmatpush1.msra.mxu0 0.0
          %1930 = vmatprep.subr.mxu0 0.0
          %1931 = vmatpush1.msra.mxu0 0.0
          %1932 = vmatprep.subr.mxu0 0.0
          %1933 = vmatpush1.msra.mxu0 0.0
          %1934 = vmatprep.subr.mxu0 0.0
          %1935 = vmatpush1.msra.mxu0 0.0
          %1936 = vmatprep.subr.mxu0 0.0
          %1937 = vmatpush1.msra.mxu0 0.0
          %1938 = vmatprep.mubr.f32.mxu0 0.0
          %v1939 = vand.u32 %v1679, 4294901760
          %1940 = vmatmul.mubr.f32.gmra.mrb[0].mxu0 %v1939
          %v1941 = vpop.f32.mrb[0].mxu0
          %v1942 = vadd.f32 %v1791, %v1941
          %v1943 = vpop.f32.mrb[0].mxu0
          %1944 = vdwg.mxu0
          %1945 = vmatprep.subr.mxu0 0.0
          %v1946 = vand.u32 %v1680, 4294901760
          %v1947 = vsub.f32 %v1680, %v1946
          %1948 = vmatpush1.msra.mxu0 %v1947
          %1949 = vmatprep.subr.mxu0 0.0
          %v1950 = vand.u32 %v1681, 4294901760
          %v1951 = vsub.f32 %v1681, %v1950
          %1952 = vmatpush1.msra.mxu0 %v1951
          %1953 = vmatprep.subr.mxu0 0.0
          %v1954 = vand.u32 %v1682, 4294901760
          %v1955 = vsub.f32 %v1682, %v1954
          %1956 = vmatpush1.msra.mxu0 %v1955
          %1957 = vmatprep.subr.mxu0 0.0
          %v1958 = vand.u32 %v1683, 4294901760
          %v1959 = vsub.f32 %v1683, %v1958
          %1960 = vmatpush1.msra.mxu0 %v1959
          %1961 = vmatprep.subr.mxu0 0.0
          %v1962 = vand.u32 %v1684, 4294901760
          %v1963 = vsub.f32 %v1684, %v1962
          %1964 = vmatpush1.msra.mxu0 %v1963
          %1965 = vmatprep.subr.mxu0 0.0
          %v1966 = vand.u32 %v1685, 4294901760
          %v1967 = vsub.f32 %v1685, %v1966
          %1968 = vmatpush1.msra.mxu0 %v1967
          %1969 = vmatprep.subr.mxu0 0.0
          %v1970 = vand.u32 %v1686, 4294901760
          %v1971 = vsub.f32 %v1686, %v1970
          %1972 = vmatpush1.msra.mxu0 %v1971
          %1973 = vmatprep.subr.mxu0 0.0
          %v1974 = vand.u32 %v1687, 4294901760
          %v1975 = vsub.f32 %v1687, %v1974
          %1976 = vmatpush1.msra.mxu0 %v1975
          %1977 = vmatprep.subr.mxu0 0.0
          %v1978 = vand.u32 %v1688, 4294901760
          %v1979 = vsub.f32 %v1688, %v1978
          %1980 = vmatpush1.msra.mxu0 %v1979
          %1981 = vmatprep.subr.mxu0 0.0
          %v1982 = vand.u32 %v1689, 4294901760
          %v1983 = vsub.f32 %v1689, %v1982
          %1984 = vmatpush1.msra.mxu0 %v1983
          %1985 = vmatprep.subr.mxu0 0.0
          %v1986 = vand.u32 %v1690, 4294901760
          %v1987 = vsub.f32 %v1690, %v1986
          %1988 = vmatpush1.msra.mxu0 %v1987
          %1989 = vmatprep.subr.mxu0 0.0
          %v1990 = vand.u32 %v1691, 4294901760
          %v1991 = vsub.f32 %v1691, %v1990
          %1992 = vmatpush1.msra.mxu0 %v1991
          %1993 = vmatprep.subr.mxu0 0.0
          %v1994 = vand.u32 %v1692, 4294901760
          %v1995 = vsub.f32 %v1692, %v1994
          %1996 = vmatpush1.msra.mxu0 %v1995
          %1997 = vmatprep.subr.mxu0 0.0
          %v1998 = vand.u32 %v1693, 4294901760
          %v1999 = vsub.f32 %v1693, %v1998
          %2000 = vmatpush1.msra.mxu0 %v1999
          %2001 = vmatprep.subr.mxu0 0.0
          %v2002 = vand.u32 %v1694, 4294901760
          %v2003 = vsub.f32 %v1694, %v2002
          %2004 = vmatpush1.msra.mxu0 %v2003
          %2005 = vmatprep.subr.mxu0 0.0
          %v2006 = vand.u32 %v1695, 4294901760
          %v2007 = vsub.f32 %v1695, %v2006
          %2008 = vmatpush1.msra.mxu0 %v2007
          %2009 = vmatprep.subr.mxu0 0.0
          %2010 = vmatpush1.msra.mxu0 0.0
          %2011 = vmatprep.subr.mxu0 0.0
          %2012 = vmatpush1.msra.mxu0 0.0
          %2013 = vmatprep.subr.mxu0 0.0
          %2014 = vmatpush1.msra.mxu0 0.0
          %2015 = vmatprep.subr.mxu0 0.0
          %2016 = vmatpush1.msra.mxu0 0.0
          %2017 = vmatprep.subr.mxu0 0.0
          %2018 = vmatpush1.msra.mxu0 0.0
          %2019 = vmatprep.subr.mxu0 0.0
          %2020 = vmatpush1.msra.mxu0 0.0
          %2021 = vmatprep.subr.mxu0 0.0
          %2022 = vmatpush1.msra.mxu0 0.0
          %2023 = vmatprep.subr.mxu0 0.0
          %2024 = vmatpush1.msra.mxu0 0.0
          %2025 = vmatprep.subr.mxu0 0.0
          %2026 = vmatpush1.msra.mxu0 0.0
          %2027 = vmatprep.subr.mxu0 0.0
          %2028 = vmatpush1.msra.mxu0 0.0
          %2029 = vmatprep.subr.mxu0 0.0
          %2030 = vmatpush1.msra.mxu0 0.0
          %2031 = vmatprep.subr.mxu0 0.0
          %2032 = vmatpush1.msra.mxu0 0.0
          %2033 = vmatprep.subr.mxu0 0.0
          %2034 = vmatpush1.msra.mxu0 0.0
          %2035 = vmatprep.subr.mxu0 0.0
          %2036 = vmatpush1.msra.mxu0 0.0
          %2037 = vmatprep.subr.mxu0 0.0
          %2038 = vmatpush1.msra.mxu0 0.0
          %2039 = vmatprep.subr.mxu0 0.0
          %2040 = vmatpush1.msra.mxu0 0.0
          %2041 = vmatprep.mubr.f32.mxu0 0.0
          %v2042 = vand.u32 %v1679, 4294901760
          %v2043 = vsub.f32 %v1679, %v2042
          %2044 = vmatmul.mubr.f32.gmra.mrb[0].mxu0 %v2043
          %v2045 = vpop.f32.mrb[0].mxu0
          %v2046 = vadd.f32 %v1942, %v2045
          %v2047 = vpop.f32.mrb[0].mxu0
          %2048 = vdwg.mxu0
          %2049 = vmatprep.subr.mxu0 0.0
          %v2050 = vand.u32 %v1680, 4294901760
          %2051 = vmatpush1.msra.mxu0 %v2050
          %2052 = vmatprep.subr.mxu0 0.0
          %v2053 = vand.u32 %v1681, 4294901760
          %2054 = vmatpush1.msra.mxu0 %v2053
          %2055 = vmatprep.subr.mxu0 0.0
          %v2056 = vand.u32 %v1682, 4294901760
          %2057 = vmatpush1.msra.mxu0 %v2056
          %2058 = vmatprep.subr.mxu0 0.0
          %v2059 = vand.u32 %v1683, 4294901760
          %2060 = vmatpush1.msra.mxu0 %v2059
          %2061 = vmatprep.subr.mxu0 0.0
          %v2062 = vand.u32 %v1684, 4294901760
          %2063 = vmatpush1.msra.mxu0 %v2062
          %2064 = vmatprep.subr.mxu0 0.0
          %v2065 = vand.u32 %v1685, 4294901760
          %2066 = vmatpush1.msra.mxu0 %v2065
          %2067 = vmatprep.subr.mxu0 0.0
          %v2068 = vand.u32 %v1686, 4294901760
          %2069 = vmatpush1.msra.mxu0 %v2068
          %2070 = vmatprep.subr.mxu0 0.0
          %v2071 = vand.u32 %v1687, 4294901760
          %2072 = vmatpush1.msra.mxu0 %v2071
          %2073 = vmatprep.subr.mxu0 0.0
          %v2074 = vand.u32 %v1688, 4294901760
          %2075 = vmatpush1.msra.mxu0 %v2074
          %2076 = vmatprep.subr.mxu0 0.0
          %v2077 = vand.u32 %v1689, 4294901760
          %2078 = vmatpush1.msra.mxu0 %v2077
          %2079 = vmatprep.subr.mxu0 0.0
          %v2080 = vand.u32 %v1690, 4294901760
          %2081 = vmatpush1.msra.mxu0 %v2080
          %2082 = vmatprep.subr.mxu0 0.0
          %v2083 = vand.u32 %v1691, 4294901760
          %2084 = vmatpush1.msra.mxu0 %v2083
          %2085 = vmatprep.subr.mxu0 0.0
          %v2086 = vand.u32 %v1692, 4294901760
          %2087 = vmatpush1.msra.mxu0 %v2086
          %2088 = vmatprep.subr.mxu0 0.0
          %v2089 = vand.u32 %v1693, 4294901760
          %2090 = vmatpush1.msra.mxu0 %v2089
          %2091 = vmatprep.subr.mxu0 0.0
          %v2092 = vand.u32 %v1694, 4294901760
          %2093 = vmatpush1.msra.mxu0 %v2092
          %2094 = vmatprep.subr.mxu0 0.0
          %v2095 = vand.u32 %v1695, 4294901760
          %2096 = vmatpush1.msra.mxu0 %v2095
          %2097 = vmatprep.subr.mxu0 0.0
          %2098 = vmatpush1.msra.mxu0 0.0
          %2099 = vmatprep.subr.mxu0 0.0
          %2100 = vmatpush1.msra.mxu0 0.0
          %2101 = vmatprep.subr.mxu0 0.0
          %2102 = vmatpush1.msra.mxu0 0.0
          %2103 = vmatprep.subr.mxu0 0.0
          %2104 = vmatpush1.msra.mxu0 0.0
          %2105 = vmatprep.subr.mxu0 0.0
          %2106 = vmatpush1.msra.mxu0 0.0
          %2107 = vmatprep.subr.mxu0 0.0
          %2108 = vmatpush1.msra.mxu0 0.0
          %2109 = vmatprep.subr.mxu0 0.0
          %2110 = vmatpush1.msra.mxu0 0.0
          %2111 = vmatprep.subr.mxu0 0.0
          %2112 = vmatpush1.msra.mxu0 0.0
          %2113 = vmatprep.subr.mxu0 0.0
          %2114 = vmatpush1.msra.mxu0 0.0
          %2115 = vmatprep.subr.mxu0 0.0
          %2116 = vmatpush1.msra.mxu0 0.0
          %2117 = vmatprep.subr.mxu0 0.0
          %2118 = vmatpush1.msra.mxu0 0.0
          %2119 = vmatprep.subr.mxu0 0.0
          %2120 = vmatpush1.msra.mxu0 0.0
          %2121 = vmatprep.subr.mxu0 0.0
          %2122 = vmatpush1.msra.mxu0 0.0
          %2123 = vmatprep.subr.mxu0 0.0
          %2124 = vmatpush1.msra.mxu0 0.0
          %2125 = vmatprep.subr.mxu0 0.0
          %2126 = vmatpush1.msra.mxu0 0.0
          %2127 = vmatprep.subr.mxu0 0.0
          %2128 = vmatpush1.msra.mxu0 0.0
          %2129 = vmatprep.mubr.f32.mxu0 0.0
          %v2130 = vand.u32 %v1679, 4294901760
          %v2131 = vsub.f32 %v1679, %v2130
          %v2132 = vand.u32 %v2131, 4294901760
          %2133 = vmatmul.mubr.f32.gmra.mrb[0].mxu0 %v2132
          %v2134 = vpop.f32.mrb[0].mxu0
          %v2135 = vadd.f32 %v2046, %v2134
          %v2136 = vpop.f32.mrb[0].mxu0
          %2137 = vdwg.mxu0
          %2138 = vmatprep.subr.mxu0 0.0
          %v2139 = vand.u32 %v1680, 4294901760
          %v2140 = vsub.f32 %v1680, %v2139
          %v2141 = vand.u32 %v2140, 4294901760
          %2142 = vmatpush1.msra.mxu0 %v2141
          %2143 = vmatprep.subr.mxu0 0.0
          %v2144 = vand.u32 %v1681, 4294901760
          %v2145 = vsub.f32 %v1681, %v2144
          %v2146 = vand.u32 %v2145, 4294901760
          %2147 = vmatpush1.msra.mxu0 %v2146
          %2148 = vmatprep.subr.mxu0 0.0
          %v2149 = vand.u32 %v1682, 4294901760
          %v2150 = vsub.f32 %v1682, %v2149
          %v2151 = vand.u32 %v2150, 4294901760
          %2152 = vmatpush1.msra.mxu0 %v2151
          %2153 = vmatprep.subr.mxu0 0.0
          %v2154 = vand.u32 %v1683, 4294901760
          %v2155 = vsub.f32 %v1683, %v2154
          %v2156 = vand.u32 %v2155, 4294901760
          %2157 = vmatpush1.msra.mxu0 %v2156
          %2158 = vmatprep.subr.mxu0 0.0
          %v2159 = vand.u32 %v1684, 4294901760
          %v2160 = vsub.f32 %v1684, %v2159
          %v2161 = vand.u32 %v2160, 4294901760
          %2162 = vmatpush1.msra.mxu0 %v2161
          %2163 = vmatprep.subr.mxu0 0.0
          %v2164 = vand.u32 %v1685, 4294901760
          %v2165 = vsub.f32 %v1685, %v2164
          %v2166 = vand.u32 %v2165, 4294901760
          %2167 = vmatpush1.msra.mxu0 %v2166
          %2168 = vmatprep.subr.mxu0 0.0
          %v2169 = vand.u32 %v1686, 4294901760
          %v2170 = vsub.f32 %v1686, %v2169
          %v2171 = vand.u32 %v2170, 4294901760
          %2172 = vmatpush1.msra.mxu0 %v2171
          %2173 = vmatprep.subr.mxu0 0.0
          %v2174 = vand.u32 %v1687, 4294901760
          %v2175 = vsub.f32 %v1687, %v2174
          %v2176 = vand.u32 %v2175, 4294901760
          %2177 = vmatpush1.msra.mxu0 %v2176
          %2178 = vmatprep.subr.mxu0 0.0
          %v2179 = vand.u32 %v1688, 4294901760
          %v2180 = vsub.f32 %v1688, %v2179
          %v2181 = vand.u32 %v2180, 4294901760
          %2182 = vmatpush1.msra.mxu0 %v2181
          %2183 = vmatprep.subr.mxu0 0.0
          %v2184 = vand.u32 %v1689, 4294901760
          %v2185 = vsub.f32 %v1689, %v2184
          %v2186 = vand.u32 %v2185, 4294901760
          %2187 = vmatpush1.msra.mxu0 %v2186
          %2188 = vmatprep.subr.mxu0 0.0
          %v2189 = vand.u32 %v1690, 4294901760
          %v2190 = vsub.f32 %v1690, %v2189
          %v2191 = vand.u32 %v2190, 4294901760
          %2192 = vmatpush1.msra.mxu0 %v2191
          %2193 = vmatprep.subr.mxu0 0.0
          %v2194 = vand.u32 %v1691, 4294901760
          %v2195 = vsub.f32 %v1691, %v2194
          %v2196 = vand.u32 %v2195, 4294901760
          %2197 = vmatpush1.msra.mxu0 %v2196
          %2198 = vmatprep.subr.mxu0 0.0
          %v2199 = vand.u32 %v1692, 4294901760
          %v2200 = vsub.f32 %v1692, %v2199
          %v2201 = vand.u32 %v2200, 4294901760
          %2202 = vmatpush1.msra.mxu0 %v2201
          %2203 = vmatprep.subr.mxu0 0.0
          %v2204 = vand.u32 %v1693, 4294901760
          %v2205 = vsub.f32 %v1693, %v2204
          %v2206 = vand.u32 %v2205, 4294901760
          %2207 = vmatpush1.msra.mxu0 %v2206
          %2208 = vmatprep.subr.mxu0 0.0
          %v2209 = vand.u32 %v1694, 4294901760
          %v2210 = vsub.f32 %v1694, %v2209
          %v2211 = vand.u32 %v2210, 4294901760
          %2212 = vmatpush1.msra.mxu0 %v2211
          %2213 = vmatprep.subr.mxu0 0.0
          %v2214 = vand.u32 %v1695, 4294901760
          %v2215 = vsub.f32 %v1695, %v2214
          %v2216 = vand.u32 %v2215, 4294901760
          %2217 = vmatpush1.msra.mxu0 %v2216
          %2218 = vmatprep.subr.mxu0 0.0
          %2219 = vmatpush1.msra.mxu0 0.0
          %2220 = vmatprep.subr.mxu0 0.0
          %2221 = vmatpush1.msra.mxu0 0.0
          %2222 = vmatprep.subr.mxu0 0.0
          %2223 = vmatpush1.msra.mxu0 0.0
          %2224 = vmatprep.subr.mxu0 0.0
          %2225 = vmatpush1.msra.mxu0 0.0
          %2226 = vmatprep.subr.mxu0 0.0
          %2227 = vmatpush1.msra.mxu0 0.0
          %2228 = vmatprep.subr.mxu0 0.0
          %2229 = vmatpush1.msra.mxu0 0.0
          %2230 = vmatprep.subr.mxu0 0.0
          %2231 = vmatpush1.msra.mxu0 0.0
          %2232 = vmatprep.subr.mxu0 0.0
          %2233 = vmatpush1.msra.mxu0 0.0
          %2234 = vmatprep.subr.mxu0 0.0
          %2235 = vmatpush1.msra.mxu0 0.0
          %2236 = vmatprep.subr.mxu0 0.0
          %2237 = vmatpush1.msra.mxu0 0.0
          %2238 = vmatprep.subr.mxu0 0.0
          %2239 = vmatpush1.msra.mxu0 0.0
          %2240 = vmatprep.subr.mxu0 0.0
          %2241 = vmatpush1.msra.mxu0 0.0
          %2242 = vmatprep.subr.mxu0 0.0
          %2243 = vmatpush1.msra.mxu0 0.0
          %2244 = vmatprep.subr.mxu0 0.0
          %2245 = vmatpush1.msra.mxu0 0.0
          %2246 = vmatprep.subr.mxu0 0.0
          %2247 = vmatpush1.msra.mxu0 0.0
          %2248 = vmatprep.subr.mxu0 0.0
          %2249 = vmatpush1.msra.mxu0 0.0
          %2250 = vmatprep.mubr.f32.mxu0 0.0
          %v2251 = vand.u32 %v1679, 4294901760
          %2252 = vmatmul.mubr.f32.gmra.mrb[0].mxu0 %v2251
          %v2253 = vpop.f32.mrb[0].mxu0
          %v2254 = vadd.f32 %v2135, %v2253
          %v2255 = vpop.f32.mrb[0].mxu0
          %2256 = vdwg.mxu0
          %2257 = vmatprep.subr.mxu0 0.0
          %v2258 = vand.u32 %v1680, 4294901760
          %2259 = vmatpush1.msra.mxu0 %v2258
          %2260 = vmatprep.subr.mxu0 0.0
          %v2261 = vand.u32 %v1681, 4294901760
          %2262 = vmatpush1.msra.mxu0 %v2261
          %2263 = vmatprep.subr.mxu0 0.0
          %v2264 = vand.u32 %v1682, 4294901760
          %2265 = vmatpush1.msra.mxu0 %v2264
          %2266 = vmatprep.subr.mxu0 0.0
          %v2267 = vand.u32 %v1683, 4294901760
          %2268 = vmatpush1.msra.mxu0 %v2267
          %2269 = vmatprep.subr.mxu0 0.0
          %v2270 = vand.u32 %v1684, 4294901760
          %2271 = vmatpush1.msra.mxu0 %v2270
          %2272 = vmatprep.subr.mxu0 0.0
          %v2273 = vand.u32 %v1685, 4294901760
          %2274 = vmatpush1.msra.mxu0 %v2273
          %2275 = vmatprep.subr.mxu0 0.0
          %v2276 = vand.u32 %v1686, 4294901760
          %2277 = vmatpush1.msra.mxu0 %v2276
          %2278 = vmatprep.subr.mxu0 0.0
          %v2279 = vand.u32 %v1687, 4294901760
          %2280 = vmatpush1.msra.mxu0 %v2279
          %2281 = vmatprep.subr.mxu0 0.0
          %v2282 = vand.u32 %v1688, 4294901760
          %2283 = vmatpush1.msra.mxu0 %v2282
          %2284 = vmatprep.subr.mxu0 0.0
          %v2285 = vand.u32 %v1689, 4294901760
          %2286 = vmatpush1.msra.mxu0 %v2285
          %2287 = vmatprep.subr.mxu0 0.0
          %v2288 = vand.u32 %v1690, 4294901760
          %2289 = vmatpush1.msra.mxu0 %v2288
          %2290 = vmatprep.subr.mxu0 0.0
          %v2291 = vand.u32 %v1691, 4294901760
          %2292 = vmatpush1.msra.mxu0 %v2291
          %2293 = vmatprep.subr.mxu0 0.0
          %v2294 = vand.u32 %v1692, 4294901760
          %2295 = vmatpush1.msra.mxu0 %v2294
          %2296 = vmatprep.subr.mxu0 0.0
          %v2297 = vand.u32 %v1693, 4294901760
          %2298 = vmatpush1.msra.mxu0 %v2297
          %2299 = vmatprep.subr.mxu0 0.0
          %v2300 = vand.u32 %v1694, 4294901760
          %2301 = vmatpush1.msra.mxu0 %v2300
          %2302 = vmatprep.subr.mxu0 0.0
          %v2303 = vand.u32 %v1695, 4294901760
          %2304 = vmatpush1.msra.mxu0 %v2303
          %2305 = vmatprep.subr.mxu0 0.0
          %2306 = vmatpush1.msra.mxu0 0.0
          %2307 = vmatprep.subr.mxu0 0.0
          %2308 = vmatpush1.msra.mxu0 0.0
          %2309 = vmatprep.subr.mxu0 0.0
          %2310 = vmatpush1.msra.mxu0 0.0
          %2311 = vmatprep.subr.mxu0 0.0
          %2312 = vmatpush1.msra.mxu0 0.0
          %2313 = vmatprep.subr.mxu0 0.0
          %2314 = vmatpush1.msra.mxu0 0.0
          %2315 = vmatprep.subr.mxu0 0.0
          %2316 = vmatpush1.msra.mxu0 0.0
          %2317 = vmatprep.subr.mxu0 0.0
          %2318 = vmatpush1.msra.mxu0 0.0
          %2319 = vmatprep.subr.mxu0 0.0
          %2320 = vmatpush1.msra.mxu0 0.0
          %2321 = vmatprep.subr.mxu0 0.0
          %2322 = vmatpush1.msra.mxu0 0.0
          %2323 = vmatprep.subr.mxu0 0.0
          %2324 = vmatpush1.msra.mxu0 0.0
          %2325 = vmatprep.subr.mxu0 0.0
          %2326 = vmatpush1.msra.mxu0 0.0
          %2327 = vmatprep.subr.mxu0 0.0
          %2328 = vmatpush1.msra.mxu0 0.0
          %2329 = vmatprep.subr.mxu0 0.0
          %2330 = vmatpush1.msra.mxu0 0.0
          %2331 = vmatprep.subr.mxu0 0.0
          %2332 = vmatpush1.msra.mxu0 0.0
          %2333 = vmatprep.subr.mxu0 0.0
          %2334 = vmatpush1.msra.mxu0 0.0
          %2335 = vmatprep.subr.mxu0 0.0
          %2336 = vmatpush1.msra.mxu0 0.0
          %2337 = vmatprep.mubr.f32.mxu0 0.0
          %v2338 = vand.u32 %v1679, 4294901760
          %2339 = vmatmul.mubr.f32.gmra.mrb[0].mxu0 %v2338
          %v2340 = vpop.f32.mrb[0].mxu0
          %v2341 = vadd.f32 %v2254, %v2340
          %v2342 = vpop.f32.mrb[0].mxu0
          %2343 = vdwg.mxu0
          %2344 = vst [vmem:[#allocation10] sm:$0xff] %v2341
        $region72: #{tpu_custom_call.1} parent=47 // pred_fallthru
          _
        // Predicated region
        $region73: #{tpu_custom_call.1} parent=47 // pred_check
          %p2345 = pneg %p191
        $region74: #{tpu_custom_call.1} parent=47 // pred_check_branch
          %2347 = sbr.rel (%p2345) target = $region76
        $region75: #{tpu_custom_call.1} parent=47 // pred_region
          %s2349 = ssub.s32 128, 128
          %2350 = vsyncadd [#allocation5], %s2349
          %s2352 = sshll.u32 [#allocation10], 4
          %s2353 = int_to_ptr.vmem [resolvable:$true] %s2352
          %2355 = dma.vmem_to_hbm [thread:$0]  %s2353, 128, %s7, [#allocation5]
        $region76: #{tpu_custom_call.1} parent=47 // pred_fallthru
          _
        // Predicated region
        $region77: #{tpu_custom_call.1} parent=47 // pred_check
          %p2356 = pneg %p191
        $region78: #{tpu_custom_call.1} parent=47 // pred_check_branch
          %2358 = sbr.rel (%p2356) target = $region80
        $region79: #{tpu_custom_call.1} parent=47 // pred_region
          %2359 = dma.done [#allocation5], 128
        $region80: #{tpu_custom_call.1} parent=47 // pred_fallthru
          _
      $region48: #{tpu_custom_call.1} parent=5 // pred_fallthru
        _
      %p2360 = scmp.le.s32.totalorder 2, %s16
      // Predicated region
      $region81: #{tpu_custom_call.1} parent=5 // pred_check
        %p2361 = pneg %p2360
      $region82: #{tpu_custom_call.1} parent=5 // pred_check_branch
        %2363 = sbr.rel (%p2361) target = $region84
      $region83: #{tpu_custom_call.1} parent=5 // pred_region
        %s2364 = ssub.s32 %s16, 2
      $region84: #{tpu_custom_call.1} parent=5 // pred_fallthru
        _
    $region6: #{tpu_custom_call.1} parent=1 // loop_footer
      %s20 = sadd.s32 1, %s16
    $region7: #{tpu_custom_call.1} parent=1 // loop_footer_branch
      %15 = sbr.rel target = $region3
    $region8: #{tpu_custom_call.1} parent=1 // loop_exit
      _
    %2365 = vsyncpa [#allocation4], 1
    %s2366 = scalar_lea.sflag [#allocation4], 1
    %2367 = vsyncpa %s2366, 1
    %2368 = vsyncpa [#allocation7], 1
    %2369 = vsyncpa [#allocation5], 1
    %s2370 = scalar_lea.sflag [#allocation5], 1
    %2371 = vsyncpa %s2370, 1

</llo_original>
